<compile_context>
chip_gen: v6e
topology: v6e:2x2x1
jax: 0.10.0
libtpu: 0.0.40
codegen_flags: <defaults>
</compile_context>

<pallas_src>
import functools

import jax
import jax.numpy as jnp
from jax.experimental import pallas as pl
from jax.experimental.pallas import tpu as pltpu


def _input_pos_kernel(pos_ref, wfull_ref, bias_ref, out_ref, *, d, two_f):
    """out = [pos | sin(2pi pos@B) | cos(2pi pos@B) | pos@W+b | 0pad] for one tile.

    Everything comes out of a single MXU projection in final lane layout; the
    only post-processing is one full-width EUP sin pass and a lane-mask select.
    """
    pos = pos_ref[...]                                              # (tn, D)
    proj = jnp.dot(pos, wfull_ref[...],
                   preferred_element_type=jnp.float32,
                   precision=jax.lax.Precision.HIGHEST)             # (tn, C)
    proj = proj + bias_ref[...]                                     # phase + bias
    lane = jax.lax.broadcasted_iota(jnp.int32, proj.shape, 1)
    fourier_lanes = (lane >= d) & (lane < d + two_f)
    # sin over the full width is still exactly one EUP push per vreg (C <= 128
    # here); non-Fourier lanes pass proj through (pos identity / latent / pad).
    out_ref[...] = jnp.where(fourier_lanes, jnp.sin(proj), proj)


def make_fused_params(bmat, w=None, b=None, *, parametric_encoding=True,
                      pad_features_to=None):
    """Fold 2*pi, the pi/2 cos phase, identity passthrough and bias into one
    (D, C) weight + (1, C) bias.  In a real model call this ONCE at construction
    time and store the result next to the raw parameters."""
    bmat = jnp.asarray(bmat, jnp.float32)
    d, f = bmat.shape
    two_pi_b = bmat * (2.0 * jnp.pi)
    w_cols = [jnp.eye(d, dtype=jnp.float32), two_pi_b, two_pi_b]
    b_cols = [jnp.zeros((d,), jnp.float32),
              jnp.zeros((f,), jnp.float32),
              jnp.full((f,), jnp.pi / 2.0, jnp.float32)]           # cos = sin(x+pi/2)
    out_cols = d + 2 * f
    if parametric_encoding:
        w = jnp.asarray(w, jnp.float32)
        l = w.shape[1]
        w_cols.append(w)
        b_cols.append(jnp.reshape(jnp.asarray(b, jnp.float32), (l,)))
        out_cols += l
    store_cols = out_cols
    if pad_features_to is not None:
        store_cols = max(out_cols, int(pad_features_to))
    pad = store_cols - out_cols
    if pad:
        w_cols.append(jnp.zeros((d, pad), jnp.float32))
        b_cols.append(jnp.zeros((pad,), jnp.float32))
    wfull = jnp.concatenate(w_cols, axis=-1)                        # (D, C)
    bias = jnp.concatenate(b_cols)[None, :]                         # (1, C)
    return wfull, bias, f


def _pick_tile(n, tile_n):
    """Row-tile choice: full extent for small n, otherwise an 8-aligned tile that
    yields an even, balanced block count so v7x's two TensorCores split evenly."""
    if n <= min(tile_n, 1024):
        return n                                   # one full-extent block
    tile = max(8, (min(tile_n, n) // 8) * 8)
    blocks = pl.cdiv(n, tile)
    if blocks % 2:
        blocks += 1                                # even step count across 2 TCs
    tile = max(8, ((-(-n // blocks)) + 7) // 8 * 8)   # balanced, 8-row aligned
    return tile


def _vmem_cap_bytes():
    """Generation-aware VMEM ceiling: ~3/4 of physical (48 MiB v7x, 96 MiB v5e/v6e)."""
    try:
        phys = int(pltpu.get_tpu_info().vmem_capacity_bytes)
    except Exception:
        phys = 64 * 1024 * 1024                    # conservative (v7x physical)
    return max(16 * 1024 * 1024, (phys * 3) // 4)


def apply_input_processing(pos, wfull, bias, num_fourier, *, tile_n=16384):
    """pos: (N, D) f32; (wfull, bias, num_fourier) from make_fused_params."""
    pos = pos.astype(jnp.float32)
    n, d = pos.shape
    store_cols = wfull.shape[1]

    tile = _pick_tile(n, tile_n)
    grid = (pl.cdiv(n, tile),)

    # Double-buffered in+out blocks plus 2x headroom; floor at the universally
    # safe 16 MiB scoped default, cap generation-aware under physical VMEM.
    per_step_bytes = 4 * tile * (d + store_cols)
    vmem_limit = int(min(max(4 * per_step_bytes, 16 * 1024 * 1024),
                         _vmem_cap_bytes()))

    kernel = functools.partial(_input_pos_kernel, d=d, two_f=2 * num_fourier)
    return pl.pallas_call(
        kernel,
        out_shape=jax.ShapeDtypeStruct((n, store_cols), jnp.float32),
        grid_spec=pltpu.PrefetchScalarGridSpec(
            num_scalar_prefetch=0,
            grid=grid,
            in_specs=[pl.BlockSpec((tile, d), lambda i: (i, 0)),
                      pl.BlockSpec((d, store_cols), lambda i: (0, 0)),
                      pl.BlockSpec((1, store_cols), lambda i: (0, 0))],
            out_specs=pl.BlockSpec((tile, store_cols), lambda i: (i, 0)),
        ),
        compiler_params=pltpu.CompilerParams(
            dimension_semantics=("parallel",),     # shards grid over v7x's 2 TCs
            vmem_limit_bytes=vmem_limit,
        ),
    )(pos, wfull, bias)


def input_processing_position(pos, bmat, w=None, b=None, *, tile_n=16384,
                              fourier_encoding=True, parametric_encoding=True,
                              pad_features_to=None):
    """Convenience wrapper matching the PyTorch module's forward semantics.

    Returns (N, D + 2F [+ L]) (zero-padded to pad_features_to if requested).
    """
    if not fourier_encoding:
        # PyTorch spec: the non-Fourier branch returns pos unchanged.
        return pos
    # TODO(synk): in a real model, call make_fused_params once at construction
    # time and store the fused (wfull, bias) instead of rebuilding per call.
    wfull, bias, f = make_fused_params(
        bmat, w, b, parametric_encoding=parametric_encoding,
        pad_features_to=pad_features_to)
    return apply_input_processing(pos, wfull, bias, f, tile_n=tile_n)


if __name__ == "__main__":
    # Small deterministic shapes: 128 points, 4-D positions, 16 freqs, 32 latent.
    N, D, F, L = 128, 4, 16, 32

    key = jax.random.PRNGKey(0)
    k_pos, k_b, k_w, k_bias, k_pos2 = jax.random.split(key, 5)

    pos = jax.random.uniform(k_pos, (N, D), dtype=jnp.float32)
    bmat = jax.random.normal(k_b, (D, F), dtype=jnp.float32)        # Fourier freqs
    w = jax.random.normal(k_w, (D, L), dtype=jnp.float32) * 0.1     # latent weight
    b = jax.random.normal(k_bias, (1, L), dtype=jnp.float32) * 0.01 # latent bias

    def reference(p, parametric=True):
        proj = (p @ bmat) * (2.0 * jnp.pi)
        parts = [p, jnp.sin(proj), jnp.cos(proj)]
        if parametric:
            parts.append(p @ w + b)
        return jnp.concatenate(parts, axis=-1)

    # 1) Full path: Fourier + parametric encoding.
    out = jax.block_until_ready(input_processing_position(pos, bmat, w, b))
    assert out.shape == (N, D + 2 * F + L)
    assert jnp.allclose(out, reference(pos), atol=1e-4, rtol=1e-4)

    # 2) Fourier-only path (no latent lanes in the fused weight or the output).
    out_f = jax.block_until_ready(
        input_processing_position(pos, bmat, parametric_encoding=False))
    assert out_f.shape == (N, D + 2 * F)
    assert jnp.allclose(out_f, reference(pos, parametric=False), atol=1e-4, rtol=1e-4)

    # 3) Remainder handling + multi-block grid: N not a multiple of the tile.
    N2 = 200
    pos2 = jax.random.uniform(k_pos2, (N2, D), dtype=jnp.float32)
    out2 = jax.block_until_ready(
        input_processing_position(pos2, bmat, w, b, tile_n=64))
    assert out2.shape == (N2, D + 2 * F + L)
    assert jnp.allclose(out2, reference(pos2), atol=1e-4, rtol=1e-4)

    # 4) Optional lane-dense (128-wide, zero-padded) output slab.
    out_p = jax.block_until_ready(
        input_processing_position(pos, bmat, w, b, pad_features_to=128))
    assert out_p.shape == (N, 128)
    assert jnp.allclose(out_p[:, :D + 2 * F + L], reference(pos), atol=1e-4, rtol=1e-4)
    assert jnp.all(out_p[:, D + 2 * F + L:] == 0.0)

    # 5) fourier_encoding=False returns pos unchanged (matches the PyTorch spec).
    assert jnp.array_equal(
        input_processing_position(pos, bmat, w, b, fourier_encoding=False), pos)

    # 6) Construction-time fused-params path (what a real model would use).
    wfull, bias, f = make_fused_params(bmat, w, b)
    out_fused = jax.block_until_ready(apply_input_processing(pos, wfull, bias, f))
    assert jnp.allclose(out_fused, reference(pos), atol=1e-4, rtol=1e-4)

    print("KERNEL_OK")
</pallas_src>

<mosaic_0001>
module attributes {stable_mosaic.version = 11 : i64} {
  func.func @_input_pos_kernel(%arg0: i32, %arg1: memref<128x4xf32, #tpu.memory_space<vmem>>, %arg2: memref<4x68xf32, #tpu.memory_space<vmem>>, %arg3: memref<1x68xf32, #tpu.memory_space<vmem>>, %arg4: memref<128x68xf32, #tpu.memory_space<vmem>>) attributes {dimension_semantics = [#tpu.dimension_semantics<parallel>], iteration_bounds = array<i64: 1>, scalar_prefetch = 0 : i64, scratch_operands = 0 : i64, tpu.core_type = #tpu.core_type<tc>, window_params = [{transform_indices = @transform_0, window_bounds = array<i64: 128, 4>}, {pipeline_mode = #tpu.pipeline_mode<synchronous>, transform_indices = @transform_1, window_bounds = array<i64: 4, 68>}, {pipeline_mode = #tpu.pipeline_mode<synchronous>, transform_indices = @transform_2, window_bounds = array<i64: 1, 68>}, {transform_indices = @transform_3, window_bounds = array<i64: 128, 68>}]} {
    %c0 = arith.constant 0 : index
    %c0_0 = arith.constant 0 : index
    %0 = vector.load %arg1[%c0, %c0_0] : memref<128x4xf32, #tpu.memory_space<vmem>>, vector<128x4xf32>
    %c0_1 = arith.constant 0 : index
    %c0_2 = arith.constant 0 : index
    %1 = vector.load %arg2[%c0_1, %c0_2] : memref<4x68xf32, #tpu.memory_space<vmem>>, vector<4x68xf32>
    %cst = arith.constant dense<0.000000e+00> : vector<128x68xf32>
    %2 = tpu.matmul %0, %1, %cst {dimension_numbers = #tpu.dot_dimension_numbers<[1], [0], [0], [1], [0, 0, 1, 1], [], []>, precision = #tpu.contract_precision<fp32>} : vector<128x4xf32>, vector<4x68xf32>, vector<128x68xf32> -> vector<128x68xf32>
    %c0_3 = arith.constant 0 : index
    %c0_4 = arith.constant 0 : index
    %3 = vector.load %arg3[%c0_3, %c0_4] : memref<1x68xf32, #tpu.memory_space<vmem>>, vector<1x68xf32>
    %4 = vector.broadcast %3 : vector<1x68xf32> to vector<128x68xf32>
    %5 = arith.addf %2, %4 : vector<128x68xf32>
    %6 = tpu.iota {dimensions = array<i32: 1>} : vector<128x68xi32>
    %c4_i32 = arith.constant 4 : i32
    %7 = vector.broadcast %c4_i32 : i32 to vector<128x68xi32>
    %8 = arith.cmpi sge, %6, %7 : vector<128x68xi32>
    %c36_i32 = arith.constant 36 : i32
    %9 = vector.broadcast %c36_i32 : i32 to vector<128x68xi32>
    %10 = arith.cmpi slt, %6, %9 : vector<128x68xi32>
    %11 = arith.andi %8, %10 : vector<128x68xi1>
    %12 = math.sin %5 : vector<128x68xf32>
    %13 = arith.select %11, %12, %5 : vector<128x68xi1>, vector<128x68xf32>
    %c0_5 = arith.constant 0 : index
    %c0_6 = arith.constant 0 : index
    %14 = vector.load %arg4[%c0_5, %c0_6] : memref<128x68xf32, #tpu.memory_space<vmem>>, vector<128x68xf32>
    tpu.vector_store %arg4[%c0_5, %c0_6], %13 {strides = array<i32>} : memref<128x68xf32, #tpu.memory_space<vmem>>, vector<128x68xf32>,
    return
  }
  func.func @transform_0(%arg0: i32) -> (i32, i32) {
    %c0_i32 = arith.constant 0 : i32
    %c0_i32_0 = arith.constant 0 : i32
    return %arg0, %c0_i32 : i32, i32
  }
  func.func @transform_1(%arg0: i32) -> (i32, i32) {
    %c0_i32 = arith.constant 0 : i32
    %c0_i32_0 = arith.constant 0 : i32
    %c0_i32_1 = arith.constant 0 : i32
    return %c0_i32, %c0_i32_0 : i32, i32
  }
  func.func @transform_2(%arg0: i32) -> (i32, i32) {
    %c0_i32 = arith.constant 0 : i32
    %c0_i32_0 = arith.constant 0 : i32
    %c0_i32_1 = arith.constant 0 : i32
    return %c0_i32, %c0_i32_0 : i32, i32
  }
  func.func @transform_3(%arg0: i32) -> (i32, i32) {
    %c0_i32 = arith.constant 0 : i32
    %c0_i32_0 = arith.constant 0 : i32
    return %arg0, %c0_i32 : i32, i32
  }
}

</mosaic_0001>

<llo_original>
// kernel: tpu_custom_call.1
$region0: #{tpu_custom_call.1}
  #allocation0 [shape = 'u32[]', space=smem, size = 0x4, offset = 0x4, fixed_abs, tag = 'smem constant byte address 0x4 - core index']
  #allocation1 [shape = 'u32[144,128]{1,0:T(1,128)}', space=vmem, size = 0x12000, scoped, tag = 'internal scratch']
  %s0 = inlined_call_operand.vmem [shape: f32[128,4], index: 0, kind: input, shape index: {}]
  %s1 = inlined_call_operand.vmem [shape: f32[4,68], index: 1, kind: input, shape index: {}]
  %s2 = inlined_call_operand.vmem [shape: f32[1,68], index: 2, kind: input, shape index: {}]
  %s3 = inlined_call_operand.vmem [shape: f32[128,68], index: 3, kind: output, shape index: {}]
  %s4 = sld [smem:[#allocation0]]
  $region22: #{tpu_custom_call.1} parent=0
    _
  %s6 = ssub.s32 1, %s4
  %s7 = scalar_select 0, %s6, %s4
  // Predicated region
  $region2: #{tpu_custom_call.1} parent=0 // pred_check
    _
  $region3: #{tpu_custom_call.1} parent=0 // pred_check_branch
    %9 = sbr.rel (0) target = $region5
  $region4: #{tpu_custom_call.1} parent=0 // pred_region
    _
  $region5: #{tpu_custom_call.1} parent=0 // pred_fallthru
    _
  // Predicated region
  $region6: #{tpu_custom_call.1} parent=0 // pred_check
    _
  $region7: #{tpu_custom_call.1} parent=0 // pred_check_branch
    %11 = sbr.rel (0) target = $region9
  $region8: #{tpu_custom_call.1} parent=0 // pred_region
    _
  $region9: #{tpu_custom_call.1} parent=0 // pred_fallthru
    _
  // Predicated region
  $region10: #{tpu_custom_call.1} parent=0 // pred_check
    _
  $region11: #{tpu_custom_call.1} parent=0 // pred_check_branch
    %13 = sbr.rel (0) target = $region13
  $region12: #{tpu_custom_call.1} parent=0 // pred_region
    _
  $region13: #{tpu_custom_call.1} parent=0 // pred_fallthru
    _
  %v14 = vld [vmem:[%s0] sm:$0xff]
  %v15 = vld [vmem:[%s0 + $0x8] sm:$0xff]
  %v16 = vld [vmem:[%s0 + $0x10] sm:$0xff]
  %v17 = vld [vmem:[%s0 + $0x18] sm:$0xff]
  %v18 = vld [vmem:[%s0 + $0x20] sm:$0xff]
  %v19 = vld [vmem:[%s0 + $0x28] sm:$0xff]
  %v20 = vld [vmem:[%s0 + $0x30] sm:$0xff]
  %v21 = vld [vmem:[%s0 + $0x38] sm:$0xff]
  %v22 = vld [vmem:[%s0 + $0x40] sm:$0xff]
  %v23 = vld [vmem:[%s0 + $0x48] sm:$0xff]
  %v24 = vld [vmem:[%s0 + $0x50] sm:$0xff]
  %v25 = vld [vmem:[%s0 + $0x58] sm:$0xff]
  %v26 = vld [vmem:[%s0 + $0x60] sm:$0xff]
  %v27 = vld [vmem:[%s0 + $0x68] sm:$0xff]
  %v28 = vld [vmem:[%s0 + $0x70] sm:$0xff]
  %v29 = vld [vmem:[%s0 + $0x78] sm:$0xff]
  %v30 = vld [vmem:[%s1] sm:$0xf]
  %v31 = vld [vmem:[%s2] sm:$0x1]
  %v33 = vlaneseq
  %v34 = vshrl.u32 %v33, 7
  %v35 = vsub.s32 0, %v34
  %v36 = vrot.slane %v31, %v35
  %vm38 = vcmask 31744
  %v40 = vsel %vm38, %v14, 0
  %v43 = vsel %vm38, %v15, 0
  %v46 = vsel %vm38, %v16, 0
  %v49 = vsel %vm38, %v17, 0
  %v52 = vsel %vm38, %v18, 0
  %v55 = vsel %vm38, %v19, 0
  %v58 = vsel %vm38, %v20, 0
  %v61 = vsel %vm38, %v21, 0
  %v64 = vsel %vm38, %v22, 0
  %v67 = vsel %vm38, %v23, 0
  %v70 = vsel %vm38, %v24, 0
  %v73 = vsel %vm38, %v25, 0
  %v76 = vsel %vm38, %v26, 0
  %v79 = vsel %vm38, %v27, 0
  %v82 = vsel %vm38, %v28, 0
  %v85 = vsel %vm38, %v29, 0
  %vm87 = vcmask 1043456
  %v89 = vsel %vm87, %v30, 0
  %91 = vmatprep.subr.mxu0 0.0
  %92 = vmatpush1.msra.mxu0 0.0
  %93 = vmatprep.subr.mxu0 0.0
  %94 = vmatpush1.msra.mxu0 0.0
  %95 = vmatprep.subr.mxu0 0.0
  %96 = vmatpush1.msra.mxu0 0.0
  %97 = vmatprep.subr.mxu0 0.0
  %98 = vmatpush1.msra.mxu0 0.0
  %99 = vmatprep.subr.mxu0 0.0
  %100 = vmatpush1.msra.mxu0 0.0
  %101 = vmatprep.subr.mxu0 0.0
  %102 = vmatpush1.msra.mxu0 0.0
  %103 = vmatprep.subr.mxu0 0.0
  %104 = vmatpush1.msra.mxu0 0.0
  %105 = vmatprep.subr.mxu0 0.0
  %106 = vmatpush1.msra.mxu0 0.0
  %107 = vmatprep.subr.mxu0 0.0
  %108 = vmatpush1.msra.mxu0 0.0
  %109 = vmatprep.subr.mxu0 0.0
  %110 = vmatpush1.msra.mxu0 0.0
  %111 = vmatprep.subr.mxu0 0.0
  %112 = vmatpush1.msra.mxu0 0.0
  %113 = vmatprep.subr.mxu0 0.0
  %114 = vmatpush1.msra.mxu0 0.0
  %115 = vmatprep.subr.mxu0 0.0
  %116 = vmatpush1.msra.mxu0 0.0
  %117 = vmatprep.subr.mxu0 0.0
  %118 = vmatpush1.msra.mxu0 0.0
  %119 = vmatprep.subr.mxu0 0.0
  %120 = vmatpush1.msra.mxu0 0.0
  %121 = vmatprep.subr.mxu0 0.0
  %v122 = vand.u32 %v89, 4294901760
  %123 = vmatpush1.msra.mxu0 %v122
  %124 = vmatprep.subr.mxu0 0.0
  %125 = vmatpush2.msra.mxu0 0.0
  %126 = vmatprep.subr.mxu0 0.0
  %127 = vmatpush2.msra.mxu0 0.0
  %128 = vmatprep.subr.mxu0 0.0
  %129 = vmatpush2.msra.mxu0 0.0
  %130 = vmatprep.subr.mxu0 0.0
  %131 = vmatpush2.msra.mxu0 0.0
  %132 = vmatprep.subr.mxu0 0.0
  %133 = vmatpush2.msra.mxu0 0.0
  %134 = vmatprep.subr.mxu0 0.0
  %135 = vmatpush2.msra.mxu0 0.0
  %136 = vmatprep.subr.mxu0 0.0
  %137 = vmatpush2.msra.mxu0 0.0
  %138 = vmatprep.subr.mxu0 0.0
  %139 = vmatpush2.msra.mxu0 0.0
  %140 = vmatprep.subr.mxu0 0.0
  %141 = vmatpush2.msra.mxu0 0.0
  %142 = vmatprep.subr.mxu0 0.0
  %143 = vmatpush2.msra.mxu0 0.0
  %144 = vmatprep.subr.mxu0 0.0
  %145 = vmatpush2.msra.mxu0 0.0
  %146 = vmatprep.subr.mxu0 0.0
  %147 = vmatpush2.msra.mxu0 0.0
  %148 = vmatprep.subr.mxu0 0.0
  %149 = vmatpush2.msra.mxu0 0.0
  %150 = vmatprep.subr.mxu0 0.0
  %151 = vmatpush2.msra.mxu0 0.0
  %152 = vmatprep.subr.mxu0 0.0
  %153 = vmatpush2.msra.mxu0 0.0
  %154 = vmatprep.subr.mxu0 0.0
  %155 = vmatpush2.msra.mxu0 0.0
  %156 = vmatprep.mubr.f32.mxu0 0.0
  %v157 = vand.u32 %v40, 4294901760
  %v158 = vsub.f32 %v40, %v157
  %v159 = vand.u32 %v158, 4294901760
  %v160 = vsub.f32 %v158, %v159
  %v161 = vand.u32 %v160, 4294901760
  %162 = vmatmul.mubr.f32.gmra.mxu0 %v161
  %v163 = vpop.f32.mrf.mxu0
  %v164 = vadd.f32 %v36, %v163
  %v165 = vpop.f32.mrf.mxu0
  %166 = vmatprep.mubr.f32.mxu0 0.0
  %v167 = vand.u32 %v43, 4294901760
  %v168 = vsub.f32 %v43, %v167
  %v169 = vand.u32 %v168, 4294901760
  %v170 = vsub.f32 %v168, %v169
  %v171 = vand.u32 %v170, 4294901760
  %172 = vmatmul.mubr.f32.gmra.mxu0 %v171
  %v173 = vpop.f32.mrf.mxu0
  %v174 = vadd.f32 %v36, %v173
  %v175 = vpop.f32.mrf.mxu0
  %176 = vmatprep.mubr.f32.mxu0 0.0
  %v177 = vand.u32 %v46, 4294901760
  %v178 = vsub.f32 %v46, %v177
  %v179 = vand.u32 %v178, 4294901760
  %v180 = vsub.f32 %v178, %v179
  %v181 = vand.u32 %v180, 4294901760
  %182 = vmatmul.mubr.f32.gmra.mxu0 %v181
  %v183 = vpop.f32.mrf.mxu0
  %v184 = vadd.f32 %v36, %v183
  %v185 = vpop.f32.mrf.mxu0
  %186 = vmatprep.mubr.f32.mxu0 0.0
  %v187 = vand.u32 %v49, 4294901760
  %v188 = vsub.f32 %v49, %v187
  %v189 = vand.u32 %v188, 4294901760
  %v190 = vsub.f32 %v188, %v189
  %v191 = vand.u32 %v190, 4294901760
  %192 = vmatmul.mubr.f32.gmra.mxu0 %v191
  %v193 = vpop.f32.mrf.mxu0
  %v194 = vadd.f32 %v36, %v193
  %v195 = vpop.f32.mrf.mxu0
  %196 = vmatprep.mubr.f32.mxu0 0.0
  %v197 = vand.u32 %v52, 4294901760
  %v198 = vsub.f32 %v52, %v197
  %v199 = vand.u32 %v198, 4294901760
  %v200 = vsub.f32 %v198, %v199
  %v201 = vand.u32 %v200, 4294901760
  %202 = vmatmul.mubr.f32.gmra.mxu0 %v201
  %v203 = vpop.f32.mrf.mxu0
  %v204 = vadd.f32 %v36, %v203
  %v205 = vpop.f32.mrf.mxu0
  %206 = vmatprep.mubr.f32.mxu0 0.0
  %v207 = vand.u32 %v55, 4294901760
  %v208 = vsub.f32 %v55, %v207
  %v209 = vand.u32 %v208, 4294901760
  %v210 = vsub.f32 %v208, %v209
  %v211 = vand.u32 %v210, 4294901760
  %212 = vmatmul.mubr.f32.gmra.mxu0 %v211
  %v213 = vpop.f32.mrf.mxu0
  %v214 = vadd.f32 %v36, %v213
  %v215 = vpop.f32.mrf.mxu0
  %216 = vmatprep.mubr.f32.mxu0 0.0
  %v217 = vand.u32 %v58, 4294901760
  %v218 = vsub.f32 %v58, %v217
  %v219 = vand.u32 %v218, 4294901760
  %v220 = vsub.f32 %v218, %v219
  %v221 = vand.u32 %v220, 4294901760
  %222 = vmatmul.mubr.f32.gmra.mxu0 %v221
  %v223 = vpop.f32.mrf.mxu0
  %v224 = vadd.f32 %v36, %v223
  %v225 = vpop.f32.mrf.mxu0
  %226 = vmatprep.mubr.f32.mxu0 0.0
  %v227 = vand.u32 %v61, 4294901760
  %v228 = vsub.f32 %v61, %v227
  %v229 = vand.u32 %v228, 4294901760
  %v230 = vsub.f32 %v228, %v229
  %v231 = vand.u32 %v230, 4294901760
  %232 = vmatmul.mubr.f32.gmra.mxu0 %v231
  %v233 = vpop.f32.mrf.mxu0
  %v234 = vadd.f32 %v36, %v233
  %v235 = vpop.f32.mrf.mxu0
  %236 = vmatprep.mubr.f32.mxu0 0.0
  %v237 = vand.u32 %v64, 4294901760
  %v238 = vsub.f32 %v64, %v237
  %v239 = vand.u32 %v238, 4294901760
  %v240 = vsub.f32 %v238, %v239
  %v241 = vand.u32 %v240, 4294901760
  %242 = vmatmul.mubr.f32.gmra.mxu0 %v241
  %v243 = vpop.f32.mrf.mxu0
  %v244 = vadd.f32 %v36, %v243
  %v245 = vpop.f32.mrf.mxu0
  %246 = vmatprep.mubr.f32.mxu0 0.0
  %v247 = vand.u32 %v67, 4294901760
  %v248 = vsub.f32 %v67, %v247
  %v249 = vand.u32 %v248, 4294901760
  %v250 = vsub.f32 %v248, %v249
  %v251 = vand.u32 %v250, 4294901760
  %252 = vmatmul.mubr.f32.gmra.mxu0 %v251
  %v253 = vpop.f32.mrf.mxu0
  %v254 = vadd.f32 %v36, %v253
  %v255 = vpop.f32.mrf.mxu0
  %256 = vmatprep.mubr.f32.mxu0 0.0
  %v257 = vand.u32 %v70, 4294901760
  %v258 = vsub.f32 %v70, %v257
  %v259 = vand.u32 %v258, 4294901760
  %v260 = vsub.f32 %v258, %v259
  %v261 = vand.u32 %v260, 4294901760
  %262 = vmatmul.mubr.f32.gmra.mxu0 %v261
  %v263 = vpop.f32.mrf.mxu0
  %v264 = vadd.f32 %v36, %v263
  %v265 = vpop.f32.mrf.mxu0
  %266 = vmatprep.mubr.f32.mxu0 0.0
  %v267 = vand.u32 %v73, 4294901760
  %v268 = vsub.f32 %v73, %v267
  %v269 = vand.u32 %v268, 4294901760
  %v270 = vsub.f32 %v268, %v269
  %v271 = vand.u32 %v270, 4294901760
  %272 = vmatmul.mubr.f32.gmra.mxu0 %v271
  %v273 = vpop.f32.mrf.mxu0
  %v274 = vadd.f32 %v36, %v273
  %v275 = vpop.f32.mrf.mxu0
  %276 = vmatprep.mubr.f32.mxu0 0.0
  %v277 = vand.u32 %v76, 4294901760
  %v278 = vsub.f32 %v76, %v277
  %v279 = vand.u32 %v278, 4294901760
  %v280 = vsub.f32 %v278, %v279
  %v281 = vand.u32 %v280, 4294901760
  %282 = vmatmul.mubr.f32.gmra.mxu0 %v281
  %v283 = vpop.f32.mrf.mxu0
  %v284 = vadd.f32 %v36, %v283
  %v285 = vpop.f32.mrf.mxu0
  %286 = vmatprep.mubr.f32.mxu0 0.0
  %v287 = vand.u32 %v79, 4294901760
  %v288 = vsub.f32 %v79, %v287
  %v289 = vand.u32 %v288, 4294901760
  %v290 = vsub.f32 %v288, %v289
  %v291 = vand.u32 %v290, 4294901760
  %292 = vmatmul.mubr.f32.gmra.mxu0 %v291
  %v293 = vpop.f32.mrf.mxu0
  %v294 = vadd.f32 %v36, %v293
  %v295 = vpop.f32.mrf.mxu0
  %296 = vmatprep.mubr.f32.mxu0 0.0
  %v297 = vand.u32 %v82, 4294901760
  %v298 = vsub.f32 %v82, %v297
  %v299 = vand.u32 %v298, 4294901760
  %v300 = vsub.f32 %v298, %v299
  %v301 = vand.u32 %v300, 4294901760
  %302 = vmatmul.mubr.f32.gmra.mxu0 %v301
  %v303 = vpop.f32.mrf.mxu0
  %v304 = vadd.f32 %v36, %v303
  %v305 = vpop.f32.mrf.mxu0
  %306 = vmatprep.mubr.f32.mxu0 0.0
  %v307 = vand.u32 %v85, 4294901760
  %v308 = vsub.f32 %v85, %v307
  %v309 = vand.u32 %v308, 4294901760
  %v310 = vsub.f32 %v308, %v309
  %v311 = vand.u32 %v310, 4294901760
  %312 = vmatmul.mubr.f32.gmra.mxu0 %v311
  %v313 = vpop.f32.mrf.mxu0
  %v314 = vadd.f32 %v36, %v313
  %v315 = vpop.f32.mrf.mxu0
  %316 = vdwg.mxu0
  %317 = vmatprep.subr.mxu0 0.0
  %318 = vmatpush1.msra.mxu0 0.0
  %319 = vmatprep.subr.mxu0 0.0
  %320 = vmatpush1.msra.mxu0 0.0
  %321 = vmatprep.subr.mxu0 0.0
  %322 = vmatpush1.msra.mxu0 0.0
  %323 = vmatprep.subr.mxu0 0.0
  %324 = vmatpush1.msra.mxu0 0.0
  %325 = vmatprep.subr.mxu0 0.0
  %326 = vmatpush1.msra.mxu0 0.0
  %327 = vmatprep.subr.mxu0 0.0
  %328 = vmatpush1.msra.mxu0 0.0
  %329 = vmatprep.subr.mxu0 0.0
  %330 = vmatpush1.msra.mxu0 0.0
  %331 = vmatprep.subr.mxu0 0.0
  %332 = vmatpush1.msra.mxu0 0.0
  %333 = vmatprep.subr.mxu0 0.0
  %334 = vmatpush1.msra.mxu0 0.0
  %335 = vmatprep.subr.mxu0 0.0
  %336 = vmatpush1.msra.mxu0 0.0
  %337 = vmatprep.subr.mxu0 0.0
  %338 = vmatpush1.msra.mxu0 0.0
  %339 = vmatprep.subr.mxu0 0.0
  %340 = vmatpush1.msra.mxu0 0.0
  %341 = vmatprep.subr.mxu0 0.0
  %342 = vmatpush1.msra.mxu0 0.0
  %343 = vmatprep.subr.mxu0 0.0
  %344 = vmatpush1.msra.mxu0 0.0
  %345 = vmatprep.subr.mxu0 0.0
  %346 = vmatpush1.msra.mxu0 0.0
  %347 = vmatprep.subr.mxu0 0.0
  %v348 = vand.u32 %v89, 4294901760
  %v349 = vsub.f32 %v89, %v348
  %v350 = vand.u32 %v349, 4294901760
  %v351 = vsub.f32 %v349, %v350
  %v352 = vand.u32 %v351, 4294901760
  %353 = vmatpush1.msra.mxu0 %v352
  %354 = vmatprep.subr.mxu0 0.0
  %355 = vmatpush2.msra.mxu0 0.0
  %356 = vmatprep.subr.mxu0 0.0
  %357 = vmatpush2.msra.mxu0 0.0
  %358 = vmatprep.subr.mxu0 0.0
  %359 = vmatpush2.msra.mxu0 0.0
  %360 = vmatprep.subr.mxu0 0.0
  %361 = vmatpush2.msra.mxu0 0.0
  %362 = vmatprep.subr.mxu0 0.0
  %363 = vmatpush2.msra.mxu0 0.0
  %364 = vmatprep.subr.mxu0 0.0
  %365 = vmatpush2.msra.mxu0 0.0
  %366 = vmatprep.subr.mxu0 0.0
  %367 = vmatpush2.msra.mxu0 0.0
  %368 = vmatprep.subr.mxu0 0.0
  %369 = vmatpush2.msra.mxu0 0.0
  %370 = vmatprep.subr.mxu0 0.0
  %371 = vmatpush2.msra.mxu0 0.0
  %372 = vmatprep.subr.mxu0 0.0
  %373 = vmatpush2.msra.mxu0 0.0
  %374 = vmatprep.subr.mxu0 0.0
  %375 = vmatpush2.msra.mxu0 0.0
  %376 = vmatprep.subr.mxu0 0.0
  %377 = vmatpush2.msra.mxu0 0.0
  %378 = vmatprep.subr.mxu0 0.0
  %379 = vmatpush2.msra.mxu0 0.0
  %380 = vmatprep.subr.mxu0 0.0
  %381 = vmatpush2.msra.mxu0 0.0
  %382 = vmatprep.subr.mxu0 0.0
  %383 = vmatpush2.msra.mxu0 0.0
  %384 = vmatprep.subr.mxu0 0.0
  %385 = vmatpush2.msra.mxu0 0.0
  %386 = vmatprep.mubr.f32.mxu0 0.0
  %v387 = vand.u32 %v40, 4294901760
  %388 = vmatmul.mubr.f32.gmra.mxu0 %v387
  %v389 = vpop.f32.mrf.mxu0
  %v390 = vadd.f32 %v164, %v389
  %v391 = vpop.f32.mrf.mxu0
  %392 = vmatprep.mubr.f32.mxu0 0.0
  %v393 = vand.u32 %v43, 4294901760
  %394 = vmatmul.mubr.f32.gmra.mxu0 %v393
  %v395 = vpop.f32.mrf.mxu0
  %v396 = vadd.f32 %v174, %v395
  %v397 = vpop.f32.mrf.mxu0
  %398 = vmatprep.mubr.f32.mxu0 0.0
  %v399 = vand.u32 %v46, 4294901760
  %400 = vmatmul.mubr.f32.gmra.mxu0 %v399
  %v401 = vpop.f32.mrf.mxu0
  %v402 = vadd.f32 %v184, %v401
  %v403 = vpop.f32.mrf.mxu0
  %404 = vmatprep.mubr.f32.mxu0 0.0
  %v405 = vand.u32 %v49, 4294901760
  %406 = vmatmul.mubr.f32.gmra.mxu0 %v405
  %v407 = vpop.f32.mrf.mxu0
  %v408 = vadd.f32 %v194, %v407
  %v409 = vpop.f32.mrf.mxu0
  %410 = vmatprep.mubr.f32.mxu0 0.0
  %v411 = vand.u32 %v52, 4294901760
  %412 = vmatmul.mubr.f32.gmra.mxu0 %v411
  %v413 = vpop.f32.mrf.mxu0
  %v414 = vadd.f32 %v204, %v413
  %v415 = vpop.f32.mrf.mxu0
  %416 = vmatprep.mubr.f32.mxu0 0.0
  %v417 = vand.u32 %v55, 4294901760
  %418 = vmatmul.mubr.f32.gmra.mxu0 %v417
  %v419 = vpop.f32.mrf.mxu0
  %v420 = vadd.f32 %v214, %v419
  %v421 = vpop.f32.mrf.mxu0
  %422 = vmatprep.mubr.f32.mxu0 0.0
  %v423 = vand.u32 %v58, 4294901760
  %424 = vmatmul.mubr.f32.gmra.mxu0 %v423
  %v425 = vpop.f32.mrf.mxu0
  %v426 = vadd.f32 %v224, %v425
  %v427 = vpop.f32.mrf.mxu0
  %428 = vmatprep.mubr.f32.mxu0 0.0
  %v429 = vand.u32 %v61, 4294901760
  %430 = vmatmul.mubr.f32.gmra.mxu0 %v429
  %v431 = vpop.f32.mrf.mxu0
  %v432 = vadd.f32 %v234, %v431
  %v433 = vpop.f32.mrf.mxu0
  %434 = vmatprep.mubr.f32.mxu0 0.0
  %v435 = vand.u32 %v64, 4294901760
  %436 = vmatmul.mubr.f32.gmra.mxu0 %v435
  %v437 = vpop.f32.mrf.mxu0
  %v438 = vadd.f32 %v244, %v437
  %v439 = vpop.f32.mrf.mxu0
  %440 = vmatprep.mubr.f32.mxu0 0.0
  %v441 = vand.u32 %v67, 4294901760
  %442 = vmatmul.mubr.f32.gmra.mxu0 %v441
  %v443 = vpop.f32.mrf.mxu0
  %v444 = vadd.f32 %v254, %v443
  %v445 = vpop.f32.mrf.mxu0
  %446 = vmatprep.mubr.f32.mxu0 0.0
  %v447 = vand.u32 %v70, 4294901760
  %448 = vmatmul.mubr.f32.gmra.mxu0 %v447
  %v449 = vpop.f32.mrf.mxu0
  %v450 = vadd.f32 %v264, %v449
  %v451 = vpop.f32.mrf.mxu0
  %452 = vmatprep.mubr.f32.mxu0 0.0
  %v453 = vand.u32 %v73, 4294901760
  %454 = vmatmul.mubr.f32.gmra.mxu0 %v453
  %v455 = vpop.f32.mrf.mxu0
  %v456 = vadd.f32 %v274, %v455
  %v457 = vpop.f32.mrf.mxu0
  %458 = vmatprep.mubr.f32.mxu0 0.0
  %v459 = vand.u32 %v76, 4294901760
  %460 = vmatmul.mubr.f32.gmra.mxu0 %v459
  %v461 = vpop.f32.mrf.mxu0
  %v462 = vadd.f32 %v284, %v461
  %v463 = vpop.f32.mrf.mxu0
  %464 = vmatprep.mubr.f32.mxu0 0.0
  %v465 = vand.u32 %v79, 4294901760
  %466 = vmatmul.mubr.f32.gmra.mxu0 %v465
  %v467 = vpop.f32.mrf.mxu0
  %v468 = vadd.f32 %v294, %v467
  %v469 = vpop.f32.mrf.mxu0
  %470 = vmatprep.mubr.f32.mxu0 0.0
  %v471 = vand.u32 %v82, 4294901760
  %472 = vmatmul.mubr.f32.gmra.mxu0 %v471
  %v473 = vpop.f32.mrf.mxu0
  %v474 = vadd.f32 %v304, %v473
  %v475 = vpop.f32.mrf.mxu0
  %476 = vmatprep.mubr.f32.mxu0 0.0
  %v477 = vand.u32 %v85, 4294901760
  %478 = vmatmul.mubr.f32.gmra.mxu0 %v477
  %v479 = vpop.f32.mrf.mxu0
  %v480 = vadd.f32 %v314, %v479
  %v481 = vpop.f32.mrf.mxu0
  %482 = vdwg.mxu0
  %483 = vmatprep.subr.mxu0 0.0
  %484 = vmatpush1.msra.mxu0 0.0
  %485 = vmatprep.subr.mxu0 0.0
  %486 = vmatpush1.msra.mxu0 0.0
  %487 = vmatprep.subr.mxu0 0.0
  %488 = vmatpush1.msra.mxu0 0.0
  %489 = vmatprep.subr.mxu0 0.0
  %490 = vmatpush1.msra.mxu0 0.0
  %491 = vmatprep.subr.mxu0 0.0
  %492 = vmatpush1.msra.mxu0 0.0
  %493 = vmatprep.subr.mxu0 0.0
  %494 = vmatpush1.msra.mxu0 0.0
  %495 = vmatprep.subr.mxu0 0.0
  %496 = vmatpush1.msra.mxu0 0.0
  %497 = vmatprep.subr.mxu0 0.0
  %498 = vmatpush1.msra.mxu0 0.0
  %499 = vmatprep.subr.mxu0 0.0
  %500 = vmatpush1.msra.mxu0 0.0
  %501 = vmatprep.subr.mxu0 0.0
  %502 = vmatpush1.msra.mxu0 0.0
  %503 = vmatprep.subr.mxu0 0.0
  %504 = vmatpush1.msra.mxu0 0.0
  %505 = vmatprep.subr.mxu0 0.0
  %506 = vmatpush1.msra.mxu0 0.0
  %507 = vmatprep.subr.mxu0 0.0
  %508 = vmatpush1.msra.mxu0 0.0
  %509 = vmatprep.subr.mxu0 0.0
  %510 = vmatpush1.msra.mxu0 0.0
  %511 = vmatprep.subr.mxu0 0.0
  %512 = vmatpush1.msra.mxu0 0.0
  %513 = vmatprep.subr.mxu0 0.0
  %v514 = vand.u32 %v89, 4294901760
  %v515 = vsub.f32 %v89, %v514
  %516 = vmatpush1.msra.mxu0 %v515
  %517 = vmatprep.subr.mxu0 0.0
  %518 = vmatpush2.msra.mxu0 0.0
  %519 = vmatprep.subr.mxu0 0.0
  %520 = vmatpush2.msra.mxu0 0.0
  %521 = vmatprep.subr.mxu0 0.0
  %522 = vmatpush2.msra.mxu0 0.0
  %523 = vmatprep.subr.mxu0 0.0
  %524 = vmatpush2.msra.mxu0 0.0
  %525 = vmatprep.subr.mxu0 0.0
  %526 = vmatpush2.msra.mxu0 0.0
  %527 = vmatprep.subr.mxu0 0.0
  %528 = vmatpush2.msra.mxu0 0.0
  %529 = vmatprep.subr.mxu0 0.0
  %530 = vmatpush2.msra.mxu0 0.0
  %531 = vmatprep.subr.mxu0 0.0
  %532 = vmatpush2.msra.mxu0 0.0
  %533 = vmatprep.subr.mxu0 0.0
  %534 = vmatpush2.msra.mxu0 0.0
  %535 = vmatprep.subr.mxu0 0.0
  %536 = vmatpush2.msra.mxu0 0.0
  %537 = vmatprep.subr.mxu0 0.0
  %538 = vmatpush2.msra.mxu0 0.0
  %539 = vmatprep.subr.mxu0 0.0
  %540 = vmatpush2.msra.mxu0 0.0
  %541 = vmatprep.subr.mxu0 0.0
  %542 = vmatpush2.msra.mxu0 0.0
  %543 = vmatprep.subr.mxu0 0.0
  %544 = vmatpush2.msra.mxu0 0.0
  %545 = vmatprep.subr.mxu0 0.0
  %546 = vmatpush2.msra.mxu0 0.0
  %547 = vmatprep.subr.mxu0 0.0
  %548 = vmatpush2.msra.mxu0 0.0
  %549 = vmatprep.mubr.f32.mxu0 0.0
  %v550 = vand.u32 %v40, 4294901760
  %v551 = vsub.f32 %v40, %v550
  %552 = vmatmul.mubr.f32.gmra.mxu0 %v551
  %v553 = vpop.f32.mrf.mxu0
  %v554 = vadd.f32 %v390, %v553
  %v555 = vpop.f32.mrf.mxu0
  %556 = vmatprep.mubr.f32.mxu0 0.0
  %v557 = vand.u32 %v43, 4294901760
  %v558 = vsub.f32 %v43, %v557
  %559 = vmatmul.mubr.f32.gmra.mxu0 %v558
  %v560 = vpop.f32.mrf.mxu0
  %v561 = vadd.f32 %v396, %v560
  %v562 = vpop.f32.mrf.mxu0
  %563 = vmatprep.mubr.f32.mxu0 0.0
  %v564 = vand.u32 %v46, 4294901760
  %v565 = vsub.f32 %v46, %v564
  %566 = vmatmul.mubr.f32.gmra.mxu0 %v565
  %v567 = vpop.f32.mrf.mxu0
  %v568 = vadd.f32 %v402, %v567
  %v569 = vpop.f32.mrf.mxu0
  %570 = vmatprep.mubr.f32.mxu0 0.0
  %v571 = vand.u32 %v49, 4294901760
  %v572 = vsub.f32 %v49, %v571
  %573 = vmatmul.mubr.f32.gmra.mxu0 %v572
  %v574 = vpop.f32.mrf.mxu0
  %v575 = vadd.f32 %v408, %v574
  %v576 = vpop.f32.mrf.mxu0
  %577 = vmatprep.mubr.f32.mxu0 0.0
  %v578 = vand.u32 %v52, 4294901760
  %v579 = vsub.f32 %v52, %v578
  %580 = vmatmul.mubr.f32.gmra.mxu0 %v579
  %v581 = vpop.f32.mrf.mxu0
  %v582 = vadd.f32 %v414, %v581
  %v583 = vpop.f32.mrf.mxu0
  %584 = vmatprep.mubr.f32.mxu0 0.0
  %v585 = vand.u32 %v55, 4294901760
  %v586 = vsub.f32 %v55, %v585
  %587 = vmatmul.mubr.f32.gmra.mxu0 %v586
  %v588 = vpop.f32.mrf.mxu0
  %v589 = vadd.f32 %v420, %v588
  %v590 = vpop.f32.mrf.mxu0
  %591 = vmatprep.mubr.f32.mxu0 0.0
  %v592 = vand.u32 %v58, 4294901760
  %v593 = vsub.f32 %v58, %v592
  %594 = vmatmul.mubr.f32.gmra.mxu0 %v593
  %v595 = vpop.f32.mrf.mxu0
  %v596 = vadd.f32 %v426, %v595
  %v597 = vpop.f32.mrf.mxu0
  %598 = vmatprep.mubr.f32.mxu0 0.0
  %v599 = vand.u32 %v61, 4294901760
  %v600 = vsub.f32 %v61, %v599
  %601 = vmatmul.mubr.f32.gmra.mxu0 %v600
  %v602 = vpop.f32.mrf.mxu0
  %v603 = vadd.f32 %v432, %v602
  %v604 = vpop.f32.mrf.mxu0
  %605 = vmatprep.mubr.f32.mxu0 0.0
  %v606 = vand.u32 %v64, 4294901760
  %v607 = vsub.f32 %v64, %v606
  %608 = vmatmul.mubr.f32.gmra.mxu0 %v607
  %v609 = vpop.f32.mrf.mxu0
  %v610 = vadd.f32 %v438, %v609
  %v611 = vpop.f32.mrf.mxu0
  %612 = vmatprep.mubr.f32.mxu0 0.0
  %v613 = vand.u32 %v67, 4294901760
  %v614 = vsub.f32 %v67, %v613
  %615 = vmatmul.mubr.f32.gmra.mxu0 %v614
  %v616 = vpop.f32.mrf.mxu0
  %v617 = vadd.f32 %v444, %v616
  %v618 = vpop.f32.mrf.mxu0
  %619 = vmatprep.mubr.f32.mxu0 0.0
  %v620 = vand.u32 %v70, 4294901760
  %v621 = vsub.f32 %v70, %v620
  %622 = vmatmul.mubr.f32.gmra.mxu0 %v621
  %v623 = vpop.f32.mrf.mxu0
  %v624 = vadd.f32 %v450, %v623
  %v625 = vpop.f32.mrf.mxu0
  %626 = vmatprep.mubr.f32.mxu0 0.0
  %v627 = vand.u32 %v73, 4294901760
  %v628 = vsub.f32 %v73, %v627
  %629 = vmatmul.mubr.f32.gmra.mxu0 %v628
  %v630 = vpop.f32.mrf.mxu0
  %v631 = vadd.f32 %v456, %v630
  %v632 = vpop.f32.mrf.mxu0
  %633 = vmatprep.mubr.f32.mxu0 0.0
  %v634 = vand.u32 %v76, 4294901760
  %v635 = vsub.f32 %v76, %v634
  %636 = vmatmul.mubr.f32.gmra.mxu0 %v635
  %v637 = vpop.f32.mrf.mxu0
  %v638 = vadd.f32 %v462, %v637
  %v639 = vpop.f32.mrf.mxu0
  %640 = vmatprep.mubr.f32.mxu0 0.0
  %v641 = vand.u32 %v79, 4294901760
  %v642 = vsub.f32 %v79, %v641
  %643 = vmatmul.mubr.f32.gmra.mxu0 %v642
  %v644 = vpop.f32.mrf.mxu0
  %v645 = vadd.f32 %v468, %v644
  %v646 = vpop.f32.mrf.mxu0
  %647 = vmatprep.mubr.f32.mxu0 0.0
  %v648 = vand.u32 %v82, 4294901760
  %v649 = vsub.f32 %v82, %v648
  %650 = vmatmul.mubr.f32.gmra.mxu0 %v649
  %v651 = vpop.f32.mrf.mxu0
  %v652 = vadd.f32 %v474, %v651
  %v653 = vpop.f32.mrf.mxu0
  %654 = vmatprep.mubr.f32.mxu0 0.0
  %v655 = vand.u32 %v85, 4294901760
  %v656 = vsub.f32 %v85, %v655
  %657 = vmatmul.mubr.f32.gmra.mxu0 %v656
  %v658 = vpop.f32.mrf.mxu0
  %v659 = vadd.f32 %v480, %v658
  %v660 = vpop.f32.mrf.mxu0
  %661 = vdwg.mxu0
  %662 = vmatprep.subr.mxu0 0.0
  %663 = vmatpush1.msra.mxu0 0.0
  %664 = vmatprep.subr.mxu0 0.0
  %665 = vmatpush1.msra.mxu0 0.0
  %666 = vmatprep.subr.mxu0 0.0
  %667 = vmatpush1.msra.mxu0 0.0
  %668 = vmatprep.subr.mxu0 0.0
  %669 = vmatpush1.msra.mxu0 0.0
  %670 = vmatprep.subr.mxu0 0.0
  %671 = vmatpush1.msra.mxu0 0.0
  %672 = vmatprep.subr.mxu0 0.0
  %673 = vmatpush1.msra.mxu0 0.0
  %674 = vmatprep.subr.mxu0 0.0
  %675 = vmatpush1.msra.mxu0 0.0
  %676 = vmatprep.subr.mxu0 0.0
  %677 = vmatpush1.msra.mxu0 0.0
  %678 = vmatprep.subr.mxu0 0.0
  %679 = vmatpush1.msra.mxu0 0.0
  %680 = vmatprep.subr.mxu0 0.0
  %681 = vmatpush1.msra.mxu0 0.0
  %682 = vmatprep.subr.mxu0 0.0
  %683 = vmatpush1.msra.mxu0 0.0
  %684 = vmatprep.subr.mxu0 0.0
  %685 = vmatpush1.msra.mxu0 0.0
  %686 = vmatprep.subr.mxu0 0.0
  %687 = vmatpush1.msra.mxu0 0.0
  %688 = vmatprep.subr.mxu0 0.0
  %689 = vmatpush1.msra.mxu0 0.0
  %690 = vmatprep.subr.mxu0 0.0
  %691 = vmatpush1.msra.mxu0 0.0
  %692 = vmatprep.subr.mxu0 0.0
  %v693 = vand.u32 %v89, 4294901760
  %694 = vmatpush1.msra.mxu0 %v693
  %695 = vmatprep.subr.mxu0 0.0
  %696 = vmatpush2.msra.mxu0 0.0
  %697 = vmatprep.subr.mxu0 0.0
  %698 = vmatpush2.msra.mxu0 0.0
  %699 = vmatprep.subr.mxu0 0.0
  %700 = vmatpush2.msra.mxu0 0.0
  %701 = vmatprep.subr.mxu0 0.0
  %702 = vmatpush2.msra.mxu0 0.0
  %703 = vmatprep.subr.mxu0 0.0
  %704 = vmatpush2.msra.mxu0 0.0
  %705 = vmatprep.subr.mxu0 0.0
  %706 = vmatpush2.msra.mxu0 0.0
  %707 = vmatprep.subr.mxu0 0.0
  %708 = vmatpush2.msra.mxu0 0.0
  %709 = vmatprep.subr.mxu0 0.0
  %710 = vmatpush2.msra.mxu0 0.0
  %711 = vmatprep.subr.mxu0 0.0
  %712 = vmatpush2.msra.mxu0 0.0
  %713 = vmatprep.subr.mxu0 0.0
  %714 = vmatpush2.msra.mxu0 0.0
  %715 = vmatprep.subr.mxu0 0.0
  %716 = vmatpush2.msra.mxu0 0.0
  %717 = vmatprep.subr.mxu0 0.0
  %718 = vmatpush2.msra.mxu0 0.0
  %719 = vmatprep.subr.mxu0 0.0
  %720 = vmatpush2.msra.mxu0 0.0
  %721 = vmatprep.subr.mxu0 0.0
  %722 = vmatpush2.msra.mxu0 0.0
  %723 = vmatprep.subr.mxu0 0.0
  %724 = vmatpush2.msra.mxu0 0.0
  %725 = vmatprep.subr.mxu0 0.0
  %726 = vmatpush2.msra.mxu0 0.0
  %727 = vmatprep.mubr.f32.mxu0 0.0
  %v728 = vand.u32 %v40, 4294901760
  %v729 = vsub.f32 %v40, %v728
  %v730 = vand.u32 %v729, 4294901760
  %731 = vmatmul.mubr.f32.gmra.mxu0 %v730
  %v732 = vpop.f32.mrf.mxu0
  %v733 = vadd.f32 %v554, %v732
  %v734 = vpop.f32.mrf.mxu0
  %735 = vmatprep.mubr.f32.mxu0 0.0
  %v736 = vand.u32 %v43, 4294901760
  %v737 = vsub.f32 %v43, %v736
  %v738 = vand.u32 %v737, 4294901760
  %739 = vmatmul.mubr.f32.gmra.mxu0 %v738
  %v740 = vpop.f32.mrf.mxu0
  %v741 = vadd.f32 %v561, %v740
  %v742 = vpop.f32.mrf.mxu0
  %743 = vmatprep.mubr.f32.mxu0 0.0
  %v744 = vand.u32 %v46, 4294901760
  %v745 = vsub.f32 %v46, %v744
  %v746 = vand.u32 %v745, 4294901760
  %747 = vmatmul.mubr.f32.gmra.mxu0 %v746
  %v748 = vpop.f32.mrf.mxu0
  %v749 = vadd.f32 %v568, %v748
  %v750 = vpop.f32.mrf.mxu0
  %751 = vmatprep.mubr.f32.mxu0 0.0
  %v752 = vand.u32 %v49, 4294901760
  %v753 = vsub.f32 %v49, %v752
  %v754 = vand.u32 %v753, 4294901760
  %755 = vmatmul.mubr.f32.gmra.mxu0 %v754
  %v756 = vpop.f32.mrf.mxu0
  %v757 = vadd.f32 %v575, %v756
  %v758 = vpop.f32.mrf.mxu0
  %759 = vmatprep.mubr.f32.mxu0 0.0
  %v760 = vand.u32 %v52, 4294901760
  %v761 = vsub.f32 %v52, %v760
  %v762 = vand.u32 %v761, 4294901760
  %763 = vmatmul.mubr.f32.gmra.mxu0 %v762
  %v764 = vpop.f32.mrf.mxu0
  %v765 = vadd.f32 %v582, %v764
  %v766 = vpop.f32.mrf.mxu0
  %767 = vmatprep.mubr.f32.mxu0 0.0
  %v768 = vand.u32 %v55, 4294901760
  %v769 = vsub.f32 %v55, %v768
  %v770 = vand.u32 %v769, 4294901760
  %771 = vmatmul.mubr.f32.gmra.mxu0 %v770
  %v772 = vpop.f32.mrf.mxu0
  %v773 = vadd.f32 %v589, %v772
  %v774 = vpop.f32.mrf.mxu0
  %775 = vmatprep.mubr.f32.mxu0 0.0
  %v776 = vand.u32 %v58, 4294901760
  %v777 = vsub.f32 %v58, %v776
  %v778 = vand.u32 %v777, 4294901760
  %779 = vmatmul.mubr.f32.gmra.mxu0 %v778
  %v780 = vpop.f32.mrf.mxu0
  %v781 = vadd.f32 %v596, %v780
  %v782 = vpop.f32.mrf.mxu0
  %783 = vmatprep.mubr.f32.mxu0 0.0
  %v784 = vand.u32 %v61, 4294901760
  %v785 = vsub.f32 %v61, %v784
  %v786 = vand.u32 %v785, 4294901760
  %787 = vmatmul.mubr.f32.gmra.mxu0 %v786
  %v788 = vpop.f32.mrf.mxu0
  %v789 = vadd.f32 %v603, %v788
  %v790 = vpop.f32.mrf.mxu0
  %791 = vmatprep.mubr.f32.mxu0 0.0
  %v792 = vand.u32 %v64, 4294901760
  %v793 = vsub.f32 %v64, %v792
  %v794 = vand.u32 %v793, 4294901760
  %795 = vmatmul.mubr.f32.gmra.mxu0 %v794
  %v796 = vpop.f32.mrf.mxu0
  %v797 = vadd.f32 %v610, %v796
  %v798 = vpop.f32.mrf.mxu0
  %799 = vmatprep.mubr.f32.mxu0 0.0
  %v800 = vand.u32 %v67, 4294901760
  %v801 = vsub.f32 %v67, %v800
  %v802 = vand.u32 %v801, 4294901760
  %803 = vmatmul.mubr.f32.gmra.mxu0 %v802
  %v804 = vpop.f32.mrf.mxu0
  %v805 = vadd.f32 %v617, %v804
  %v806 = vpop.f32.mrf.mxu0
  %807 = vmatprep.mubr.f32.mxu0 0.0
  %v808 = vand.u32 %v70, 4294901760
  %v809 = vsub.f32 %v70, %v808
  %v810 = vand.u32 %v809, 4294901760
  %811 = vmatmul.mubr.f32.gmra.mxu0 %v810
  %v812 = vpop.f32.mrf.mxu0
  %v813 = vadd.f32 %v624, %v812
  %v814 = vpop.f32.mrf.mxu0
  %815 = vmatprep.mubr.f32.mxu0 0.0
  %v816 = vand.u32 %v73, 4294901760
  %v817 = vsub.f32 %v73, %v816
  %v818 = vand.u32 %v817, 4294901760
  %819 = vmatmul.mubr.f32.gmra.mxu0 %v818
  %v820 = vpop.f32.mrf.mxu0
  %v821 = vadd.f32 %v631, %v820
  %v822 = vpop.f32.mrf.mxu0
  %823 = vmatprep.mubr.f32.mxu0 0.0
  %v824 = vand.u32 %v76, 4294901760
  %v825 = vsub.f32 %v76, %v824
  %v826 = vand.u32 %v825, 4294901760
  %827 = vmatmul.mubr.f32.gmra.mxu0 %v826
  %v828 = vpop.f32.mrf.mxu0
  %v829 = vadd.f32 %v638, %v828
  %v830 = vpop.f32.mrf.mxu0
  %831 = vmatprep.mubr.f32.mxu0 0.0
  %v832 = vand.u32 %v79, 4294901760
  %v833 = vsub.f32 %v79, %v832
  %v834 = vand.u32 %v833, 4294901760
  %835 = vmatmul.mubr.f32.gmra.mxu0 %v834
  %v836 = vpop.f32.mrf.mxu0
  %v837 = vadd.f32 %v645, %v836
  %v838 = vpop.f32.mrf.mxu0
  %839 = vmatprep.mubr.f32.mxu0 0.0
  %v840 = vand.u32 %v82, 4294901760
  %v841 = vsub.f32 %v82, %v840
  %v842 = vand.u32 %v841, 4294901760
  %843 = vmatmul.mubr.f32.gmra.mxu0 %v842
  %v844 = vpop.f32.mrf.mxu0
  %v845 = vadd.f32 %v652, %v844
  %v846 = vpop.f32.mrf.mxu0
  %847 = vmatprep.mubr.f32.mxu0 0.0
  %v848 = vand.u32 %v85, 4294901760
  %v849 = vsub.f32 %v85, %v848
  %v850 = vand.u32 %v849, 4294901760
  %851 = vmatmul.mubr.f32.gmra.mxu0 %v850
  %v852 = vpop.f32.mrf.mxu0
  %v853 = vadd.f32 %v659, %v852
  %v854 = vpop.f32.mrf.mxu0
  %855 = vdwg.mxu0
  %856 = vmatprep.subr.mxu0 0.0
  %857 = vmatpush1.msra.mxu0 0.0
  %858 = vmatprep.subr.mxu0 0.0
  %859 = vmatpush1.msra.mxu0 0.0
  %860 = vmatprep.subr.mxu0 0.0
  %861 = vmatpush1.msra.mxu0 0.0
  %862 = vmatprep.subr.mxu0 0.0
  %863 = vmatpush1.msra.mxu0 0.0
  %864 = vmatprep.subr.mxu0 0.0
  %865 = vmatpush1.msra.mxu0 0.0
  %866 = vmatprep.subr.mxu0 0.0
  %867 = vmatpush1.msra.mxu0 0.0
  %868 = vmatprep.subr.mxu0 0.0
  %869 = vmatpush1.msra.mxu0 0.0
  %870 = vmatprep.subr.mxu0 0.0
  %871 = vmatpush1.msra.mxu0 0.0
  %872 = vmatprep.subr.mxu0 0.0
  %873 = vmatpush1.msra.mxu0 0.0
  %874 = vmatprep.subr.mxu0 0.0
  %875 = vmatpush1.msra.mxu0 0.0
  %876 = vmatprep.subr.mxu0 0.0
  %877 = vmatpush1.msra.mxu0 0.0
  %878 = vmatprep.subr.mxu0 0.0
  %879 = vmatpush1.msra.mxu0 0.0
  %880 = vmatprep.subr.mxu0 0.0
  %881 = vmatpush1.msra.mxu0 0.0
  %882 = vmatprep.subr.mxu0 0.0
  %883 = vmatpush1.msra.mxu0 0.0
  %884 = vmatprep.subr.mxu0 0.0
  %885 = vmatpush1.msra.mxu0 0.0
  %886 = vmatprep.subr.mxu0 0.0
  %v887 = vand.u32 %v89, 4294901760
  %v888 = vsub.f32 %v89, %v887
  %v889 = vand.u32 %v888, 4294901760
  %890 = vmatpush1.msra.mxu0 %v889
  %891 = vmatprep.subr.mxu0 0.0
  %892 = vmatpush2.msra.mxu0 0.0
  %893 = vmatprep.subr.mxu0 0.0
  %894 = vmatpush2.msra.mxu0 0.0
  %895 = vmatprep.subr.mxu0 0.0
  %896 = vmatpush2.msra.mxu0 0.0
  %897 = vmatprep.subr.mxu0 0.0
  %898 = vmatpush2.msra.mxu0 0.0
  %899 = vmatprep.subr.mxu0 0.0
  %900 = vmatpush2.msra.mxu0 0.0
  %901 = vmatprep.subr.mxu0 0.0
  %902 = vmatpush2.msra.mxu0 0.0
  %903 = vmatprep.subr.mxu0 0.0
  %904 = vmatpush2.msra.mxu0 0.0
  %905 = vmatprep.subr.mxu0 0.0
  %906 = vmatpush2.msra.mxu0 0.0
  %907 = vmatprep.subr.mxu0 0.0
  %908 = vmatpush2.msra.mxu0 0.0
  %909 = vmatprep.subr.mxu0 0.0
  %910 = vmatpush2.msra.mxu0 0.0
  %911 = vmatprep.subr.mxu0 0.0
  %912 = vmatpush2.msra.mxu0 0.0
  %913 = vmatprep.subr.mxu0 0.0
  %914 = vmatpush2.msra.mxu0 0.0
  %915 = vmatprep.subr.mxu0 0.0
  %916 = vmatpush2.msra.mxu0 0.0
  %917 = vmatprep.subr.mxu0 0.0
  %918 = vmatpush2.msra.mxu0 0.0
  %919 = vmatprep.subr.mxu0 0.0
  %920 = vmatpush2.msra.mxu0 0.0
  %921 = vmatprep.subr.mxu0 0.0
  %922 = vmatpush2.msra.mxu0 0.0
  %923 = vmatprep.mubr.f32.mxu0 0.0
  %v924 = vand.u32 %v40, 4294901760
  %925 = vmatmul.mubr.f32.gmra.mxu0 %v924
  %v926 = vpop.f32.mrf.mxu0
  %v927 = vadd.f32 %v733, %v926
  %v928 = vpop.f32.mrf.mxu0
  %929 = vmatprep.mubr.f32.mxu0 0.0
  %v930 = vand.u32 %v43, 4294901760
  %931 = vmatmul.mubr.f32.gmra.mxu0 %v930
  %v932 = vpop.f32.mrf.mxu0
  %v933 = vadd.f32 %v741, %v932
  %v934 = vpop.f32.mrf.mxu0
  %935 = vmatprep.mubr.f32.mxu0 0.0
  %v936 = vand.u32 %v46, 4294901760
  %937 = vmatmul.mubr.f32.gmra.mxu0 %v936
  %v938 = vpop.f32.mrf.mxu0
  %v939 = vadd.f32 %v749, %v938
  %v940 = vpop.f32.mrf.mxu0
  %941 = vmatprep.mubr.f32.mxu0 0.0
  %v942 = vand.u32 %v49, 4294901760
  %943 = vmatmul.mubr.f32.gmra.mxu0 %v942
  %v944 = vpop.f32.mrf.mxu0
  %v945 = vadd.f32 %v757, %v944
  %v946 = vpop.f32.mrf.mxu0
  %947 = vmatprep.mubr.f32.mxu0 0.0
  %v948 = vand.u32 %v52, 4294901760
  %949 = vmatmul.mubr.f32.gmra.mxu0 %v948
  %v950 = vpop.f32.mrf.mxu0
  %v951 = vadd.f32 %v765, %v950
  %v952 = vpop.f32.mrf.mxu0
  %953 = vmatprep.mubr.f32.mxu0 0.0
  %v954 = vand.u32 %v55, 4294901760
  %955 = vmatmul.mubr.f32.gmra.mxu0 %v954
  %v956 = vpop.f32.mrf.mxu0
  %v957 = vadd.f32 %v773, %v956
  %v958 = vpop.f32.mrf.mxu0
  %959 = vmatprep.mubr.f32.mxu0 0.0
  %v960 = vand.u32 %v58, 4294901760
  %961 = vmatmul.mubr.f32.gmra.mxu0 %v960
  %v962 = vpop.f32.mrf.mxu0
  %v963 = vadd.f32 %v781, %v962
  %v964 = vpop.f32.mrf.mxu0
  %965 = vmatprep.mubr.f32.mxu0 0.0
  %v966 = vand.u32 %v61, 4294901760
  %967 = vmatmul.mubr.f32.gmra.mxu0 %v966
  %v968 = vpop.f32.mrf.mxu0
  %v969 = vadd.f32 %v789, %v968
  %v970 = vpop.f32.mrf.mxu0
  %971 = vmatprep.mubr.f32.mxu0 0.0
  %v972 = vand.u32 %v64, 4294901760
  %973 = vmatmul.mubr.f32.gmra.mxu0 %v972
  %v974 = vpop.f32.mrf.mxu0
  %v975 = vadd.f32 %v797, %v974
  %v976 = vpop.f32.mrf.mxu0
  %977 = vmatprep.mubr.f32.mxu0 0.0
  %v978 = vand.u32 %v67, 4294901760
  %979 = vmatmul.mubr.f32.gmra.mxu0 %v978
  %v980 = vpop.f32.mrf.mxu0
  %v981 = vadd.f32 %v805, %v980
  %v982 = vpop.f32.mrf.mxu0
  %983 = vmatprep.mubr.f32.mxu0 0.0
  %v984 = vand.u32 %v70, 4294901760
  %985 = vmatmul.mubr.f32.gmra.mxu0 %v984
  %v986 = vpop.f32.mrf.mxu0
  %v987 = vadd.f32 %v813, %v986
  %v988 = vpop.f32.mrf.mxu0
  %989 = vmatprep.mubr.f32.mxu0 0.0
  %v990 = vand.u32 %v73, 4294901760
  %991 = vmatmul.mubr.f32.gmra.mxu0 %v990
  %v992 = vpop.f32.mrf.mxu0
  %v993 = vadd.f32 %v821, %v992
  %v994 = vpop.f32.mrf.mxu0
  %995 = vmatprep.mubr.f32.mxu0 0.0
  %v996 = vand.u32 %v76, 4294901760
  %997 = vmatmul.mubr.f32.gmra.mxu0 %v996
  %v998 = vpop.f32.mrf.mxu0
  %v999 = vadd.f32 %v829, %v998
  %v1000 = vpop.f32.mrf.mxu0
  %1001 = vmatprep.mubr.f32.mxu0 0.0
  %v1002 = vand.u32 %v79, 4294901760
  %1003 = vmatmul.mubr.f32.gmra.mxu0 %v1002
  %v1004 = vpop.f32.mrf.mxu0
  %v1005 = vadd.f32 %v837, %v1004
  %v1006 = vpop.f32.mrf.mxu0
  %1007 = vmatprep.mubr.f32.mxu0 0.0
  %v1008 = vand.u32 %v82, 4294901760
  %1009 = vmatmul.mubr.f32.gmra.mxu0 %v1008
  %v1010 = vpop.f32.mrf.mxu0
  %v1011 = vadd.f32 %v845, %v1010
  %v1012 = vpop.f32.mrf.mxu0
  %1013 = vmatprep.mubr.f32.mxu0 0.0
  %v1014 = vand.u32 %v85, 4294901760
  %1015 = vmatmul.mubr.f32.gmra.mxu0 %v1014
  %v1016 = vpop.f32.mrf.mxu0
  %v1017 = vadd.f32 %v853, %v1016
  %v1018 = vpop.f32.mrf.mxu0
  %1019 = vdwg.mxu0
  %1020 = vmatprep.subr.mxu0 0.0
  %1021 = vmatpush1.msra.mxu0 0.0
  %1022 = vmatprep.subr.mxu0 0.0
  %1023 = vmatpush1.msra.mxu0 0.0
  %1024 = vmatprep.subr.mxu0 0.0
  %1025 = vmatpush1.msra.mxu0 0.0
  %1026 = vmatprep.subr.mxu0 0.0
  %1027 = vmatpush1.msra.mxu0 0.0
  %1028 = vmatprep.subr.mxu0 0.0
  %1029 = vmatpush1.msra.mxu0 0.0
  %1030 = vmatprep.subr.mxu0 0.0
  %1031 = vmatpush1.msra.mxu0 0.0
  %1032 = vmatprep.subr.mxu0 0.0
  %1033 = vmatpush1.msra.mxu0 0.0
  %1034 = vmatprep.subr.mxu0 0.0
  %1035 = vmatpush1.msra.mxu0 0.0
  %1036 = vmatprep.subr.mxu0 0.0
  %1037 = vmatpush1.msra.mxu0 0.0
  %1038 = vmatprep.subr.mxu0 0.0
  %1039 = vmatpush1.msra.mxu0 0.0
  %1040 = vmatprep.subr.mxu0 0.0
  %1041 = vmatpush1.msra.mxu0 0.0
  %1042 = vmatprep.subr.mxu0 0.0
  %1043 = vmatpush1.msra.mxu0 0.0
  %1044 = vmatprep.subr.mxu0 0.0
  %1045 = vmatpush1.msra.mxu0 0.0
  %1046 = vmatprep.subr.mxu0 0.0
  %1047 = vmatpush1.msra.mxu0 0.0
  %1048 = vmatprep.subr.mxu0 0.0
  %1049 = vmatpush1.msra.mxu0 0.0
  %1050 = vmatprep.subr.mxu0 0.0
  %v1051 = vand.u32 %v89, 4294901760
  %1052 = vmatpush1.msra.mxu0 %v1051
  %1053 = vmatprep.subr.mxu0 0.0
  %1054 = vmatpush2.msra.mxu0 0.0
  %1055 = vmatprep.subr.mxu0 0.0
  %1056 = vmatpush2.msra.mxu0 0.0
  %1057 = vmatprep.subr.mxu0 0.0
  %1058 = vmatpush2.msra.mxu0 0.0
  %1059 = vmatprep.subr.mxu0 0.0
  %1060 = vmatpush2.msra.mxu0 0.0
  %1061 = vmatprep.subr.mxu0 0.0
  %1062 = vmatpush2.msra.mxu0 0.0
  %1063 = vmatprep.subr.mxu0 0.0
  %1064 = vmatpush2.msra.mxu0 0.0
  %1065 = vmatprep.subr.mxu0 0.0
  %1066 = vmatpush2.msra.mxu0 0.0
  %1067 = vmatprep.subr.mxu0 0.0
  %1068 = vmatpush2.msra.mxu0 0.0
  %1069 = vmatprep.subr.mxu0 0.0
  %1070 = vmatpush2.msra.mxu0 0.0
  %1071 = vmatprep.subr.mxu0 0.0
  %1072 = vmatpush2.msra.mxu0 0.0
  %1073 = vmatprep.subr.mxu0 0.0
  %1074 = vmatpush2.msra.mxu0 0.0
  %1075 = vmatprep.subr.mxu0 0.0
  %1076 = vmatpush2.msra.mxu0 0.0
  %1077 = vmatprep.subr.mxu0 0.0
  %1078 = vmatpush2.msra.mxu0 0.0
  %1079 = vmatprep.subr.mxu0 0.0
  %1080 = vmatpush2.msra.mxu0 0.0
  %1081 = vmatprep.subr.mxu0 0.0
  %1082 = vmatpush2.msra.mxu0 0.0
  %1083 = vmatprep.subr.mxu0 0.0
  %1084 = vmatpush2.msra.mxu0 0.0
  %1085 = vmatprep.mubr.f32.mxu0 0.0
  %v1086 = vand.u32 %v40, 4294901760
  %1087 = vmatmul.mubr.f32.gmra.mxu0 %v1086
  %v1088 = vpop.f32.mrf.mxu0
  %v1089 = vadd.f32 %v927, %v1088
  %v1090 = vpop.f32.mrf.mxu0
  %1091 = vmatprep.mubr.f32.mxu0 0.0
  %v1092 = vand.u32 %v43, 4294901760
  %1093 = vmatmul.mubr.f32.gmra.mxu0 %v1092
  %v1094 = vpop.f32.mrf.mxu0
  %v1095 = vadd.f32 %v933, %v1094
  %v1096 = vpop.f32.mrf.mxu0
  %1097 = vmatprep.mubr.f32.mxu0 0.0
  %v1098 = vand.u32 %v46, 4294901760
  %1099 = vmatmul.mubr.f32.gmra.mxu0 %v1098
  %v1100 = vpop.f32.mrf.mxu0
  %v1101 = vadd.f32 %v939, %v1100
  %v1102 = vpop.f32.mrf.mxu0
  %1103 = vmatprep.mubr.f32.mxu0 0.0
  %v1104 = vand.u32 %v49, 4294901760
  %1105 = vmatmul.mubr.f32.gmra.mxu0 %v1104
  %v1106 = vpop.f32.mrf.mxu0
  %v1107 = vadd.f32 %v945, %v1106
  %v1108 = vpop.f32.mrf.mxu0
  %1109 = vmatprep.mubr.f32.mxu0 0.0
  %v1110 = vand.u32 %v52, 4294901760
  %1111 = vmatmul.mubr.f32.gmra.mxu0 %v1110
  %v1112 = vpop.f32.mrf.mxu0
  %v1113 = vadd.f32 %v951, %v1112
  %v1114 = vpop.f32.mrf.mxu0
  %1115 = vmatprep.mubr.f32.mxu0 0.0
  %v1116 = vand.u32 %v55, 4294901760
  %1117 = vmatmul.mubr.f32.gmra.mxu0 %v1116
  %v1118 = vpop.f32.mrf.mxu0
  %v1119 = vadd.f32 %v957, %v1118
  %v1120 = vpop.f32.mrf.mxu0
  %1121 = vmatprep.mubr.f32.mxu0 0.0
  %v1122 = vand.u32 %v58, 4294901760
  %1123 = vmatmul.mubr.f32.gmra.mxu0 %v1122
  %v1124 = vpop.f32.mrf.mxu0
  %v1125 = vadd.f32 %v963, %v1124
  %v1126 = vpop.f32.mrf.mxu0
  %1127 = vmatprep.mubr.f32.mxu0 0.0
  %v1128 = vand.u32 %v61, 4294901760
  %1129 = vmatmul.mubr.f32.gmra.mxu0 %v1128
  %v1130 = vpop.f32.mrf.mxu0
  %v1131 = vadd.f32 %v969, %v1130
  %v1132 = vpop.f32.mrf.mxu0
  %1133 = vmatprep.mubr.f32.mxu0 0.0
  %v1134 = vand.u32 %v64, 4294901760
  %1135 = vmatmul.mubr.f32.gmra.mxu0 %v1134
  %v1136 = vpop.f32.mrf.mxu0
  %v1137 = vadd.f32 %v975, %v1136
  %v1138 = vpop.f32.mrf.mxu0
  %1139 = vmatprep.mubr.f32.mxu0 0.0
  %v1140 = vand.u32 %v67, 4294901760
  %1141 = vmatmul.mubr.f32.gmra.mxu0 %v1140
  %v1142 = vpop.f32.mrf.mxu0
  %v1143 = vadd.f32 %v981, %v1142
  %v1144 = vpop.f32.mrf.mxu0
  %1145 = vmatprep.mubr.f32.mxu0 0.0
  %v1146 = vand.u32 %v70, 4294901760
  %1147 = vmatmul.mubr.f32.gmra.mxu0 %v1146
  %v1148 = vpop.f32.mrf.mxu0
  %v1149 = vadd.f32 %v987, %v1148
  %v1150 = vpop.f32.mrf.mxu0
  %1151 = vmatprep.mubr.f32.mxu0 0.0
  %v1152 = vand.u32 %v73, 4294901760
  %1153 = vmatmul.mubr.f32.gmra.mxu0 %v1152
  %v1154 = vpop.f32.mrf.mxu0
  %v1155 = vadd.f32 %v993, %v1154
  %v1156 = vpop.f32.mrf.mxu0
  %1157 = vmatprep.mubr.f32.mxu0 0.0
  %v1158 = vand.u32 %v76, 4294901760
  %1159 = vmatmul.mubr.f32.gmra.mxu0 %v1158
  %v1160 = vpop.f32.mrf.mxu0
  %v1161 = vadd.f32 %v999, %v1160
  %v1162 = vpop.f32.mrf.mxu0
  %1163 = vmatprep.mubr.f32.mxu0 0.0
  %v1164 = vand.u32 %v79, 4294901760
  %1165 = vmatmul.mubr.f32.gmra.mxu0 %v1164
  %v1166 = vpop.f32.mrf.mxu0
  %v1167 = vadd.f32 %v1005, %v1166
  %v1168 = vpop.f32.mrf.mxu0
  %1169 = vmatprep.mubr.f32.mxu0 0.0
  %v1170 = vand.u32 %v82, 4294901760
  %1171 = vmatmul.mubr.f32.gmra.mxu0 %v1170
  %v1172 = vpop.f32.mrf.mxu0
  %v1173 = vadd.f32 %v1011, %v1172
  %v1174 = vpop.f32.mrf.mxu0
  %1175 = vmatprep.mubr.f32.mxu0 0.0
  %v1176 = vand.u32 %v85, 4294901760
  %1177 = vmatmul.mubr.f32.gmra.mxu0 %v1176
  %v1178 = vpop.f32.mrf.mxu0
  %v1179 = vadd.f32 %v1017, %v1178
  %v1180 = vpop.f32.mrf.mxu0
  %1181 = vdwg.mxu0
  %v1182 = vlaneseq
  %v1183 = vand.u32 %v1182, 127
  %vm1184 = vcmp.ge.s32.totalorder %v1183, 4
  %vm1185 = vcmp.lt.s32.totalorder %v1183, 36
  %vm1186 = vmand %vm1184, %vm1185
  %v1187 = vand.u32 2147483647, %v1089
  %vm1188 = vcmp.le.f32.partialorder %v1187, 0.7853982
  %vm1189 = vcmp.lt.s32.totalorder %v1089, 0
  %v1190 = vand.u32 %v1089, 2139095040
  %v1191 = vshrl.u32 %v1190, 23
  %v1192 = vsub.s32 %v1191, 127
  %v1193 = vand.u32 2147483647, %v1089
  %v1194 = vand.u32 %v1193, 8388607
  %v1195 = vor.u32 %v1194, 8388608
  %v1196 = vsub.s32 0, %v1195
  %v1197 = vadd.s32 %v1192, 1
  %vm1198 = vcmp.gt.s32.totalorder %v1197, 0
  %v1199 = vsel %vm1198, %v1197, 0
  %v1200 = vshrl.u32 %v1199, 5
  %v1201 = vand.u32 %v1199, 31
  %v1202 = vsub.s32 32, %v1201
  %v1203 = vshrl.u32 683565275, %v1202
  %v1204 = vshll.u32 683565275, %v1201
  %v1205 = vshrl.u32 2475754826, %v1202
  %v1206 = vor.u32 %v1204, %v1205
  %v1207 = vshll.u32 2475754826, %v1201
  %v1208 = vshrl.u32 2131351028, %v1202
  %v1209 = vor.u32 %v1207, %v1208
  %v1210 = vshll.u32 2131351028, %v1201
  %v1211 = vshrl.u32 2102212464, %v1202
  %v1212 = vor.u32 %v1210, %v1211
  %v1213 = vshll.u32 2102212464, %v1201
  %v1214 = vshrl.u32 920167782, %v1202
  %v1215 = vor.u32 %v1213, %v1214
  %v1216 = vshll.u32 920167782, %v1201
  %v1217 = vshrl.u32 1326507024, %v1202
  %v1218 = vor.u32 %v1216, %v1217
  %vm1219 = vcmp.lt.s32.totalorder %v1200, 1
  %vm1220 = vcmp.lt.s32.totalorder %v1200, 2
  %vm1221 = vcmp.lt.s32.totalorder %v1200, 3
  %vm1222 = vcmp.lt.s32.totalorder %v1200, 4
  %v1223 = vsel %vm1219, %v1203, %v1206
  %v1224 = vsel %vm1222, %v1212, 2102212464
  %v1225 = vsel %vm1221, %v1209, %v1224
  %v1226 = vsel %vm1220, %v1223, %v1225
  %v1227 = vsel %vm1219, %v1206, %v1209
  %v1228 = vsel %vm1222, %v1215, 920167782
  %v1229 = vsel %vm1221, %v1212, %v1228
  %v1230 = vsel %vm1220, %v1227, %v1229
  %v1231 = vsel %vm1219, %v1209, %v1212
  %v1232 = vsel %vm1222, %v1218, 1326507024
  %v1233 = vsel %vm1221, %v1215, %v1232
  %v1234 = vsel %vm1220, %v1231, %v1233
  %v1235 = vshll.u32 %v1195, 8
  %v1236 = vmul.u32.u64.compose %v1235, %v1234
  %v1237 = vextract.low.u32 %v1236
  %v1238 = vextract.high.u32 %v1236
  %v1239 = vmul.u32.u64.compose %v1235, %v1230
  %v1240 = vextract.low.u32 %v1239
  %v1241 = vextract.high.u32 %v1239
  %v1242 = vmul.u32 %v1235, %v1226
  %v1243 = vadd.s32 %v1238, %v1240
  %vm1244 = vc.u32 %v1238, %v1240
  %v1245 = vadd.s32 %v1241, 1
  %v1246 = vsel %vm1244, %v1245, %v1241
  %v1247 = vadd.s32 %v1242, %v1246
  %v1248 = vadd.s32 %v1247, 536870912
  %v1249 = vshrl.u32 %v1248, 30
  %v1250 = vshll.u32 %v1249, 30
  %v1251 = vsub.s32 %v1247, %v1250
  %vm1252 = vcmp.lt.s32.totalorder %v1251, 0
  %v1253 = vsub.s32 0, %v1251
  %v1254 = vsel %vm1252, %v1253, %v1251
  %v1255 = vclz %v1254
  %v1256 = vsub.s32 %v1255, 2
  %vm1257 = vcmp.gt.s32.totalorder 0, %v1256
  %v1258 = vsel %vm1257, 0, %v1256
  %v1259 = vsub.s32 32, %v1258
  %v1260 = vshll.u32 %v1251, %v1258
  %v1261 = vshrl.u32 %v1243, %v1259
  %v1262 = vor.u32 %v1260, %v1261
  %v1263 = vsub.s32 4294967266, %v1258
  %v1264 = vadd.s32 %v1263, 127
  %v1265 = vshll.u32 %v1264, 23
  %v1266 = vor.u32 4788187, %v1265
  %v1267 = vand.u32 2147483647, %v1266
  %v1269 = vcvt.s32.f32 %v1262
  %v1270 = vmul.f32 %v1269, %v1267
  %v1271 = vxor.u32 %v1270, 2147483648
  %v1272 = vsel %vm1189, %v1271, %v1270
  %v1273 = vsub.s32 4, %v1249
  %v1274 = vsel %vm1189, %v1273, %v1249
  %v1275 = vsel %vm1188, %v1089, %v1272
  %v1276 = vsel %vm1188, 0, %v1274
  %v1277 = vcosq.f32.pop %v1275
  %v1278 = vsinq.f32.pop %v1275
  %vm1279 = vweird.f32 %v1089
  %v1280 = vadd.s32 %v1276, 3
  %v1281 = vand.u32 %v1280, 3
  %vm1282 = vcmp.lt.s32.totalorder %v1281, 2
  %vm1283 = vcmp.eq.s32.totalorder %v1281, 0
  %v1284 = vxor.u32 %v1278, 2147483648
  %v1285 = vsel %vm1283, %v1277, %v1284
  %vm1286 = vcmp.eq.s32.totalorder %v1281, 2
  %v1287 = vxor.u32 %v1277, 2147483648
  %v1288 = vsel %vm1286, %v1287, %v1278
  %v1289 = vsel %vm1282, %v1285, %v1288
  %v1290 = vsel %vm1279, nan, %v1289
  %v1291 = vand.u32 2147483647, %v1095
  %vm1292 = vcmp.le.f32.partialorder %v1291, 0.7853982
  %vm1293 = vcmp.lt.s32.totalorder %v1095, 0
  %v1294 = vand.u32 %v1095, 2139095040
  %v1295 = vshrl.u32 %v1294, 23
  %v1296 = vsub.s32 %v1295, 127
  %v1297 = vand.u32 2147483647, %v1095
  %v1298 = vand.u32 %v1297, 8388607
  %v1299 = vor.u32 %v1298, 8388608
  %v1300 = vsub.s32 0, %v1299
  %v1301 = vadd.s32 %v1296, 1
  %vm1302 = vcmp.gt.s32.totalorder %v1301, 0
  %v1303 = vsel %vm1302, %v1301, 0
  %v1304 = vshrl.u32 %v1303, 5
  %v1305 = vand.u32 %v1303, 31
  %v1306 = vsub.s32 32, %v1305
  %v1307 = vshrl.u32 683565275, %v1306
  %v1308 = vshll.u32 683565275, %v1305
  %v1309 = vshrl.u32 2475754826, %v1306
  %v1310 = vor.u32 %v1308, %v1309
  %v1311 = vshll.u32 2475754826, %v1305
  %v1312 = vshrl.u32 2131351028, %v1306
  %v1313 = vor.u32 %v1311, %v1312
  %v1314 = vshll.u32 2131351028, %v1305
  %v1315 = vshrl.u32 2102212464, %v1306
  %v1316 = vor.u32 %v1314, %v1315
  %v1317 = vshll.u32 2102212464, %v1305
  %v1318 = vshrl.u32 920167782, %v1306
  %v1319 = vor.u32 %v1317, %v1318
  %v1320 = vshll.u32 920167782, %v1305
  %v1321 = vshrl.u32 1326507024, %v1306
  %v1322 = vor.u32 %v1320, %v1321
  %vm1323 = vcmp.lt.s32.totalorder %v1304, 1
  %vm1324 = vcmp.lt.s32.totalorder %v1304, 2
  %vm1325 = vcmp.lt.s32.totalorder %v1304, 3
  %vm1326 = vcmp.lt.s32.totalorder %v1304, 4
  %v1327 = vsel %vm1323, %v1307, %v1310
  %v1328 = vsel %vm1326, %v1316, 2102212464
  %v1329 = vsel %vm1325, %v1313, %v1328
  %v1330 = vsel %vm1324, %v1327, %v1329
  %v1331 = vsel %vm1323, %v1310, %v1313
  %v1332 = vsel %vm1326, %v1319, 920167782
  %v1333 = vsel %vm1325, %v1316, %v1332
  %v1334 = vsel %vm1324, %v1331, %v1333
  %v1335 = vsel %vm1323, %v1313, %v1316
  %v1336 = vsel %vm1326, %v1322, 1326507024
  %v1337 = vsel %vm1325, %v1319, %v1336
  %v1338 = vsel %vm1324, %v1335, %v1337
  %v1339 = vshll.u32 %v1299, 8
  %v1340 = vmul.u32.u64.compose %v1339, %v1338
  %v1341 = vextract.low.u32 %v1340
  %v1342 = vextract.high.u32 %v1340
  %v1343 = vmul.u32.u64.compose %v1339, %v1334
  %v1344 = vextract.low.u32 %v1343
  %v1345 = vextract.high.u32 %v1343
  %v1346 = vmul.u32 %v1339, %v1330
  %v1347 = vadd.s32 %v1342, %v1344
  %vm1348 = vc.u32 %v1342, %v1344
  %v1349 = vadd.s32 %v1345, 1
  %v1350 = vsel %vm1348, %v1349, %v1345
  %v1351 = vadd.s32 %v1346, %v1350
  %v1352 = vadd.s32 %v1351, 536870912
  %v1353 = vshrl.u32 %v1352, 30
  %v1354 = vshll.u32 %v1353, 30
  %v1355 = vsub.s32 %v1351, %v1354
  %vm1356 = vcmp.lt.s32.totalorder %v1355, 0
  %v1357 = vsub.s32 0, %v1355
  %v1358 = vsel %vm1356, %v1357, %v1355
  %v1359 = vclz %v1358
  %v1360 = vsub.s32 %v1359, 2
  %vm1361 = vcmp.gt.s32.totalorder 0, %v1360
  %v1362 = vsel %vm1361, 0, %v1360
  %v1363 = vsub.s32 32, %v1362
  %v1364 = vshll.u32 %v1355, %v1362
  %v1365 = vshrl.u32 %v1347, %v1363
  %v1366 = vor.u32 %v1364, %v1365
  %v1367 = vsub.s32 4294967266, %v1362
  %v1368 = vadd.s32 %v1367, 127
  %v1369 = vshll.u32 %v1368, 23
  %v1370 = vor.u32 4788187, %v1369
  %v1371 = vand.u32 2147483647, %v1370
  %v1373 = vcvt.s32.f32 %v1366
  %v1374 = vmul.f32 %v1373, %v1371
  %v1375 = vxor.u32 %v1374, 2147483648
  %v1376 = vsel %vm1293, %v1375, %v1374
  %v1377 = vsub.s32 4, %v1353
  %v1378 = vsel %vm1293, %v1377, %v1353
  %v1379 = vsel %vm1292, %v1095, %v1376
  %v1380 = vsel %vm1292, 0, %v1378
  %v1381 = vcosq.f32.pop %v1379
  %v1382 = vsinq.f32.pop %v1379
  %vm1383 = vweird.f32 %v1095
  %v1384 = vadd.s32 %v1380, 3
  %v1385 = vand.u32 %v1384, 3
  %vm1386 = vcmp.lt.s32.totalorder %v1385, 2
  %vm1387 = vcmp.eq.s32.totalorder %v1385, 0
  %v1388 = vxor.u32 %v1382, 2147483648
  %v1389 = vsel %vm1387, %v1381, %v1388
  %vm1390 = vcmp.eq.s32.totalorder %v1385, 2
  %v1391 = vxor.u32 %v1381, 2147483648
  %v1392 = vsel %vm1390, %v1391, %v1382
  %v1393 = vsel %vm1386, %v1389, %v1392
  %v1394 = vsel %vm1383, nan, %v1393
  %v1395 = vand.u32 2147483647, %v1101
  %vm1396 = vcmp.le.f32.partialorder %v1395, 0.7853982
  %vm1397 = vcmp.lt.s32.totalorder %v1101, 0
  %v1398 = vand.u32 %v1101, 2139095040
  %v1399 = vshrl.u32 %v1398, 23
  %v1400 = vsub.s32 %v1399, 127
  %v1401 = vand.u32 2147483647, %v1101
  %v1402 = vand.u32 %v1401, 8388607
  %v1403 = vor.u32 %v1402, 8388608
  %v1404 = vsub.s32 0, %v1403
  %v1405 = vadd.s32 %v1400, 1
  %vm1406 = vcmp.gt.s32.totalorder %v1405, 0
  %v1407 = vsel %vm1406, %v1405, 0
  %v1408 = vshrl.u32 %v1407, 5
  %v1409 = vand.u32 %v1407, 31
  %v1410 = vsub.s32 32, %v1409
  %v1411 = vshrl.u32 683565275, %v1410
  %v1412 = vshll.u32 683565275, %v1409
  %v1413 = vshrl.u32 2475754826, %v1410
  %v1414 = vor.u32 %v1412, %v1413
  %v1415 = vshll.u32 2475754826, %v1409
  %v1416 = vshrl.u32 2131351028, %v1410
  %v1417 = vor.u32 %v1415, %v1416
  %v1418 = vshll.u32 2131351028, %v1409
  %v1419 = vshrl.u32 2102212464, %v1410
  %v1420 = vor.u32 %v1418, %v1419
  %v1421 = vshll.u32 2102212464, %v1409
  %v1422 = vshrl.u32 920167782, %v1410
  %v1423 = vor.u32 %v1421, %v1422
  %v1424 = vshll.u32 920167782, %v1409
  %v1425 = vshrl.u32 1326507024, %v1410
  %v1426 = vor.u32 %v1424, %v1425
  %vm1427 = vcmp.lt.s32.totalorder %v1408, 1
  %vm1428 = vcmp.lt.s32.totalorder %v1408, 2
  %vm1429 = vcmp.lt.s32.totalorder %v1408, 3
  %vm1430 = vcmp.lt.s32.totalorder %v1408, 4
  %v1431 = vsel %vm1427, %v1411, %v1414
  %v1432 = vsel %vm1430, %v1420, 2102212464
  %v1433 = vsel %vm1429, %v1417, %v1432
  %v1434 = vsel %vm1428, %v1431, %v1433
  %v1435 = vsel %vm1427, %v1414, %v1417
  %v1436 = vsel %vm1430, %v1423, 920167782
  %v1437 = vsel %vm1429, %v1420, %v1436
  %v1438 = vsel %vm1428, %v1435, %v1437
  %v1439 = vsel %vm1427, %v1417, %v1420
  %v1440 = vsel %vm1430, %v1426, 1326507024
  %v1441 = vsel %vm1429, %v1423, %v1440
  %v1442 = vsel %vm1428, %v1439, %v1441
  %v1443 = vshll.u32 %v1403, 8
  %v1444 = vmul.u32.u64.compose %v1443, %v1442
  %v1445 = vextract.low.u32 %v1444
  %v1446 = vextract.high.u32 %v1444
  %v1447 = vmul.u32.u64.compose %v1443, %v1438
  %v1448 = vextract.low.u32 %v1447
  %v1449 = vextract.high.u32 %v1447
  %v1450 = vmul.u32 %v1443, %v1434
  %v1451 = vadd.s32 %v1446, %v1448
  %vm1452 = vc.u32 %v1446, %v1448
  %v1453 = vadd.s32 %v1449, 1
  %v1454 = vsel %vm1452, %v1453, %v1449
  %v1455 = vadd.s32 %v1450, %v1454
  %v1456 = vadd.s32 %v1455, 536870912
  %v1457 = vshrl.u32 %v1456, 30
  %v1458 = vshll.u32 %v1457, 30
  %v1459 = vsub.s32 %v1455, %v1458
  %vm1460 = vcmp.lt.s32.totalorder %v1459, 0
  %v1461 = vsub.s32 0, %v1459
  %v1462 = vsel %vm1460, %v1461, %v1459
  %v1463 = vclz %v1462
  %v1464 = vsub.s32 %v1463, 2
  %vm1465 = vcmp.gt.s32.totalorder 0, %v1464
  %v1466 = vsel %vm1465, 0, %v1464
  %v1467 = vsub.s32 32, %v1466
  %v1468 = vshll.u32 %v1459, %v1466
  %v1469 = vshrl.u32 %v1451, %v1467
  %v1470 = vor.u32 %v1468, %v1469
  %v1471 = vsub.s32 4294967266, %v1466
  %v1472 = vadd.s32 %v1471, 127
  %v1473 = vshll.u32 %v1472, 23
  %v1474 = vor.u32 4788187, %v1473
  %v1475 = vand.u32 2147483647, %v1474
  %v1477 = vcvt.s32.f32 %v1470
  %v1478 = vmul.f32 %v1477, %v1475
  %v1479 = vxor.u32 %v1478, 2147483648
  %v1480 = vsel %vm1397, %v1479, %v1478
  %v1481 = vsub.s32 4, %v1457
  %v1482 = vsel %vm1397, %v1481, %v1457
  %v1483 = vsel %vm1396, %v1101, %v1480
  %v1484 = vsel %vm1396, 0, %v1482
  %v1485 = vcosq.f32.pop %v1483
  %v1486 = vsinq.f32.pop %v1483
  %vm1487 = vweird.f32 %v1101
  %v1488 = vadd.s32 %v1484, 3
  %v1489 = vand.u32 %v1488, 3
  %vm1490 = vcmp.lt.s32.totalorder %v1489, 2
  %vm1491 = vcmp.eq.s32.totalorder %v1489, 0
  %v1492 = vxor.u32 %v1486, 2147483648
  %v1493 = vsel %vm1491, %v1485, %v1492
  %vm1494 = vcmp.eq.s32.totalorder %v1489, 2
  %v1495 = vxor.u32 %v1485, 2147483648
  %v1496 = vsel %vm1494, %v1495, %v1486
  %v1497 = vsel %vm1490, %v1493, %v1496
  %v1498 = vsel %vm1487, nan, %v1497
  %v1499 = vand.u32 2147483647, %v1107
  %vm1500 = vcmp.le.f32.partialorder %v1499, 0.7853982
  %vm1501 = vcmp.lt.s32.totalorder %v1107, 0
  %v1502 = vand.u32 %v1107, 2139095040
  %v1503 = vshrl.u32 %v1502, 23
  %v1504 = vsub.s32 %v1503, 127
  %v1505 = vand.u32 2147483647, %v1107
  %v1506 = vand.u32 %v1505, 8388607
  %v1507 = vor.u32 %v1506, 8388608
  %v1508 = vsub.s32 0, %v1507
  %v1509 = vadd.s32 %v1504, 1
  %vm1510 = vcmp.gt.s32.totalorder %v1509, 0
  %v1511 = vsel %vm1510, %v1509, 0
  %v1512 = vshrl.u32 %v1511, 5
  %v1513 = vand.u32 %v1511, 31
  %v1514 = vsub.s32 32, %v1513
  %v1515 = vshrl.u32 683565275, %v1514
  %v1516 = vshll.u32 683565275, %v1513
  %v1517 = vshrl.u32 2475754826, %v1514
  %v1518 = vor.u32 %v1516, %v1517
  %v1519 = vshll.u32 2475754826, %v1513
  %v1520 = vshrl.u32 2131351028, %v1514
  %v1521 = vor.u32 %v1519, %v1520
  %v1522 = vshll.u32 2131351028, %v1513
  %v1523 = vshrl.u32 2102212464, %v1514
  %v1524 = vor.u32 %v1522, %v1523
  %v1525 = vshll.u32 2102212464, %v1513
  %v1526 = vshrl.u32 920167782, %v1514
  %v1527 = vor.u32 %v1525, %v1526
  %v1528 = vshll.u32 920167782, %v1513
  %v1529 = vshrl.u32 1326507024, %v1514
  %v1530 = vor.u32 %v1528, %v1529
  %vm1531 = vcmp.lt.s32.totalorder %v1512, 1
  %vm1532 = vcmp.lt.s32.totalorder %v1512, 2
  %vm1533 = vcmp.lt.s32.totalorder %v1512, 3
  %vm1534 = vcmp.lt.s32.totalorder %v1512, 4
  %v1535 = vsel %vm1531, %v1515, %v1518
  %v1536 = vsel %vm1534, %v1524, 2102212464
  %v1537 = vsel %vm1533, %v1521, %v1536
  %v1538 = vsel %vm1532, %v1535, %v1537
  %v1539 = vsel %vm1531, %v1518, %v1521
  %v1540 = vsel %vm1534, %v1527, 920167782
  %v1541 = vsel %vm1533, %v1524, %v1540
  %v1542 = vsel %vm1532, %v1539, %v1541
  %v1543 = vsel %vm1531, %v1521, %v1524
  %v1544 = vsel %vm1534, %v1530, 1326507024
  %v1545 = vsel %vm1533, %v1527, %v1544
  %v1546 = vsel %vm1532, %v1543, %v1545
  %v1547 = vshll.u32 %v1507, 8
  %v1548 = vmul.u32.u64.compose %v1547, %v1546
  %v1549 = vextract.low.u32 %v1548
  %v1550 = vextract.high.u32 %v1548
  %v1551 = vmul.u32.u64.compose %v1547, %v1542
  %v1552 = vextract.low.u32 %v1551
  %v1553 = vextract.high.u32 %v1551
  %v1554 = vmul.u32 %v1547, %v1538
  %v1555 = vadd.s32 %v1550, %v1552
  %vm1556 = vc.u32 %v1550, %v1552
  %v1557 = vadd.s32 %v1553, 1
  %v1558 = vsel %vm1556, %v1557, %v1553
  %v1559 = vadd.s32 %v1554, %v1558
  %v1560 = vadd.s32 %v1559, 536870912
  %v1561 = vshrl.u32 %v1560, 30
  %v1562 = vshll.u32 %v1561, 30
  %v1563 = vsub.s32 %v1559, %v1562
  %vm1564 = vcmp.lt.s32.totalorder %v1563, 0
  %v1565 = vsub.s32 0, %v1563
  %v1566 = vsel %vm1564, %v1565, %v1563
  %v1567 = vclz %v1566
  %v1568 = vsub.s32 %v1567, 2
  %vm1569 = vcmp.gt.s32.totalorder 0, %v1568
  %v1570 = vsel %vm1569, 0, %v1568
  %v1571 = vsub.s32 32, %v1570
  %v1572 = vshll.u32 %v1563, %v1570
  %v1573 = vshrl.u32 %v1555, %v1571
  %v1574 = vor.u32 %v1572, %v1573
  %v1575 = vsub.s32 4294967266, %v1570
  %v1576 = vadd.s32 %v1575, 127
  %v1577 = vshll.u32 %v1576, 23
  %v1578 = vor.u32 4788187, %v1577
  %v1579 = vand.u32 2147483647, %v1578
  %v1581 = vcvt.s32.f32 %v1574
  %v1582 = vmul.f32 %v1581, %v1579
  %v1583 = vxor.u32 %v1582, 2147483648
  %v1584 = vsel %vm1501, %v1583, %v1582
  %v1585 = vsub.s32 4, %v1561
  %v1586 = vsel %vm1501, %v1585, %v1561
  %v1587 = vsel %vm1500, %v1107, %v1584
  %v1588 = vsel %vm1500, 0, %v1586
  %v1589 = vcosq.f32.pop %v1587
  %v1590 = vsinq.f32.pop %v1587
  %vm1591 = vweird.f32 %v1107
  %v1592 = vadd.s32 %v1588, 3
  %v1593 = vand.u32 %v1592, 3
  %vm1594 = vcmp.lt.s32.totalorder %v1593, 2
  %vm1595 = vcmp.eq.s32.totalorder %v1593, 0
  %v1596 = vxor.u32 %v1590, 2147483648
  %v1597 = vsel %vm1595, %v1589, %v1596
  %vm1598 = vcmp.eq.s32.totalorder %v1593, 2
  %v1599 = vxor.u32 %v1589, 2147483648
  %v1600 = vsel %vm1598, %v1599, %v1590
  %v1601 = vsel %vm1594, %v1597, %v1600
  %v1602 = vsel %vm1591, nan, %v1601
  %v1603 = vand.u32 2147483647, %v1113
  %vm1604 = vcmp.le.f32.partialorder %v1603, 0.7853982
  %vm1605 = vcmp.lt.s32.totalorder %v1113, 0
  %v1606 = vand.u32 %v1113, 2139095040
  %v1607 = vshrl.u32 %v1606, 23
  %v1608 = vsub.s32 %v1607, 127
  %v1609 = vand.u32 2147483647, %v1113
  %v1610 = vand.u32 %v1609, 8388607
  %v1611 = vor.u32 %v1610, 8388608
  %v1612 = vsub.s32 0, %v1611
  %v1613 = vadd.s32 %v1608, 1
  %vm1614 = vcmp.gt.s32.totalorder %v1613, 0
  %v1615 = vsel %vm1614, %v1613, 0
  %v1616 = vshrl.u32 %v1615, 5
  %v1617 = vand.u32 %v1615, 31
  %v1618 = vsub.s32 32, %v1617
  %v1619 = vshrl.u32 683565275, %v1618
  %v1620 = vshll.u32 683565275, %v1617
  %v1621 = vshrl.u32 2475754826, %v1618
  %v1622 = vor.u32 %v1620, %v1621
  %v1623 = vshll.u32 2475754826, %v1617
  %v1624 = vshrl.u32 2131351028, %v1618
  %v1625 = vor.u32 %v1623, %v1624
  %v1626 = vshll.u32 2131351028, %v1617
  %v1627 = vshrl.u32 2102212464, %v1618
  %v1628 = vor.u32 %v1626, %v1627
  %v1629 = vshll.u32 2102212464, %v1617
  %v1630 = vshrl.u32 920167782, %v1618
  %v1631 = vor.u32 %v1629, %v1630
  %v1632 = vshll.u32 920167782, %v1617
  %v1633 = vshrl.u32 1326507024, %v1618
  %v1634 = vor.u32 %v1632, %v1633
  %vm1635 = vcmp.lt.s32.totalorder %v1616, 1
  %vm1636 = vcmp.lt.s32.totalorder %v1616, 2
  %vm1637 = vcmp.lt.s32.totalorder %v1616, 3
  %vm1638 = vcmp.lt.s32.totalorder %v1616, 4
  %v1639 = vsel %vm1635, %v1619, %v1622
  %v1640 = vsel %vm1638, %v1628, 2102212464
  %v1641 = vsel %vm1637, %v1625, %v1640
  %v1642 = vsel %vm1636, %v1639, %v1641
  %v1643 = vsel %vm1635, %v1622, %v1625
  %v1644 = vsel %vm1638, %v1631, 920167782
  %v1645 = vsel %vm1637, %v1628, %v1644
  %v1646 = vsel %vm1636, %v1643, %v1645
  %v1647 = vsel %vm1635, %v1625, %v1628
  %v1648 = vsel %vm1638, %v1634, 1326507024
  %v1649 = vsel %vm1637, %v1631, %v1648
  %v1650 = vsel %vm1636, %v1647, %v1649
  %v1651 = vshll.u32 %v1611, 8
  %v1652 = vmul.u32.u64.compose %v1651, %v1650
  %v1653 = vextract.low.u32 %v1652
  %v1654 = vextract.high.u32 %v1652
  %v1655 = vmul.u32.u64.compose %v1651, %v1646
  %v1656 = vextract.low.u32 %v1655
  %v1657 = vextract.high.u32 %v1655
  %v1658 = vmul.u32 %v1651, %v1642
  %v1659 = vadd.s32 %v1654, %v1656
  %vm1660 = vc.u32 %v1654, %v1656
  %v1661 = vadd.s32 %v1657, 1
  %v1662 = vsel %vm1660, %v1661, %v1657
  %v1663 = vadd.s32 %v1658, %v1662
  %v1664 = vadd.s32 %v1663, 536870912
  %v1665 = vshrl.u32 %v1664, 30
  %v1666 = vshll.u32 %v1665, 30
  %v1667 = vsub.s32 %v1663, %v1666
  %vm1668 = vcmp.lt.s32.totalorder %v1667, 0
  %v1669 = vsub.s32 0, %v1667
  %v1670 = vsel %vm1668, %v1669, %v1667
  %v1671 = vclz %v1670
  %v1672 = vsub.s32 %v1671, 2
  %vm1673 = vcmp.gt.s32.totalorder 0, %v1672
  %v1674 = vsel %vm1673, 0, %v1672
  %v1675 = vsub.s32 32, %v1674
  %v1676 = vshll.u32 %v1667, %v1674
  %v1677 = vshrl.u32 %v1659, %v1675
  %v1678 = vor.u32 %v1676, %v1677
  %v1679 = vsub.s32 4294967266, %v1674
  %v1680 = vadd.s32 %v1679, 127
  %v1681 = vshll.u32 %v1680, 23
  %v1682 = vor.u32 4788187, %v1681
  %v1683 = vand.u32 2147483647, %v1682
  %v1685 = vcvt.s32.f32 %v1678
  %v1686 = vmul.f32 %v1685, %v1683
  %v1687 = vxor.u32 %v1686, 2147483648
  %v1688 = vsel %vm1605, %v1687, %v1686
  %v1689 = vsub.s32 4, %v1665
  %v1690 = vsel %vm1605, %v1689, %v1665
  %v1691 = vsel %vm1604, %v1113, %v1688
  %v1692 = vsel %vm1604, 0, %v1690
  %v1693 = vcosq.f32.pop %v1691
  %v1694 = vsinq.f32.pop %v1691
  %vm1695 = vweird.f32 %v1113
  %v1696 = vadd.s32 %v1692, 3
  %v1697 = vand.u32 %v1696, 3
  %vm1698 = vcmp.lt.s32.totalorder %v1697, 2
  %vm1699 = vcmp.eq.s32.totalorder %v1697, 0
  %v1700 = vxor.u32 %v1694, 2147483648
  %v1701 = vsel %vm1699, %v1693, %v1700
  %vm1702 = vcmp.eq.s32.totalorder %v1697, 2
  %v1703 = vxor.u32 %v1693, 2147483648
  %v1704 = vsel %vm1702, %v1703, %v1694
  %v1705 = vsel %vm1698, %v1701, %v1704
  %v1706 = vsel %vm1695, nan, %v1705
  %v1707 = vand.u32 2147483647, %v1119
  %vm1708 = vcmp.le.f32.partialorder %v1707, 0.7853982
  %vm1709 = vcmp.lt.s32.totalorder %v1119, 0
  %v1710 = vand.u32 %v1119, 2139095040
  %v1711 = vshrl.u32 %v1710, 23
  %v1712 = vsub.s32 %v1711, 127
  %v1713 = vand.u32 2147483647, %v1119
  %v1714 = vand.u32 %v1713, 8388607
  %v1715 = vor.u32 %v1714, 8388608
  %v1716 = vsub.s32 0, %v1715
  %v1717 = vadd.s32 %v1712, 1
  %vm1718 = vcmp.gt.s32.totalorder %v1717, 0
  %v1719 = vsel %vm1718, %v1717, 0
  %v1720 = vshrl.u32 %v1719, 5
  %v1721 = vand.u32 %v1719, 31
  %v1722 = vsub.s32 32, %v1721
  %v1723 = vshrl.u32 683565275, %v1722
  %v1724 = vshll.u32 683565275, %v1721
  %v1725 = vshrl.u32 2475754826, %v1722
  %v1726 = vor.u32 %v1724, %v1725
  %v1727 = vshll.u32 2475754826, %v1721
  %v1728 = vshrl.u32 2131351028, %v1722
  %v1729 = vor.u32 %v1727, %v1728
  %v1730 = vshll.u32 2131351028, %v1721
  %v1731 = vshrl.u32 2102212464, %v1722
  %v1732 = vor.u32 %v1730, %v1731
  %v1733 = vshll.u32 2102212464, %v1721
  %v1734 = vshrl.u32 920167782, %v1722
  %v1735 = vor.u32 %v1733, %v1734
  %v1736 = vshll.u32 920167782, %v1721
  %v1737 = vshrl.u32 1326507024, %v1722
  %v1738 = vor.u32 %v1736, %v1737
  %vm1739 = vcmp.lt.s32.totalorder %v1720, 1
  %vm1740 = vcmp.lt.s32.totalorder %v1720, 2
  %vm1741 = vcmp.lt.s32.totalorder %v1720, 3
  %vm1742 = vcmp.lt.s32.totalorder %v1720, 4
  %v1743 = vsel %vm1739, %v1723, %v1726
  %v1744 = vsel %vm1742, %v1732, 2102212464
  %v1745 = vsel %vm1741, %v1729, %v1744
  %v1746 = vsel %vm1740, %v1743, %v1745
  %v1747 = vsel %vm1739, %v1726, %v1729
  %v1748 = vsel %vm1742, %v1735, 920167782
  %v1749 = vsel %vm1741, %v1732, %v1748
  %v1750 = vsel %vm1740, %v1747, %v1749
  %v1751 = vsel %vm1739, %v1729, %v1732
  %v1752 = vsel %vm1742, %v1738, 1326507024
  %v1753 = vsel %vm1741, %v1735, %v1752
  %v1754 = vsel %vm1740, %v1751, %v1753
  %v1755 = vshll.u32 %v1715, 8
  %v1756 = vmul.u32.u64.compose %v1755, %v1754
  %v1757 = vextract.low.u32 %v1756
  %v1758 = vextract.high.u32 %v1756
  %v1759 = vmul.u32.u64.compose %v1755, %v1750
  %v1760 = vextract.low.u32 %v1759
  %v1761 = vextract.high.u32 %v1759
  %v1762 = vmul.u32 %v1755, %v1746
  %v1763 = vadd.s32 %v1758, %v1760
  %vm1764 = vc.u32 %v1758, %v1760
  %v1765 = vadd.s32 %v1761, 1
  %v1766 = vsel %vm1764, %v1765, %v1761
  %v1767 = vadd.s32 %v1762, %v1766
  %v1768 = vadd.s32 %v1767, 536870912
  %v1769 = vshrl.u32 %v1768, 30
  %v1770 = vshll.u32 %v1769, 30
  %v1771 = vsub.s32 %v1767, %v1770
  %vm1772 = vcmp.lt.s32.totalorder %v1771, 0
  %v1773 = vsub.s32 0, %v1771
  %v1774 = vsel %vm1772, %v1773, %v1771
  %v1775 = vclz %v1774
  %v1776 = vsub.s32 %v1775, 2
  %vm1777 = vcmp.gt.s32.totalorder 0, %v1776
  %v1778 = vsel %vm1777, 0, %v1776
  %v1779 = vsub.s32 32, %v1778
  %v1780 = vshll.u32 %v1771, %v1778
  %v1781 = vshrl.u32 %v1763, %v1779
  %v1782 = vor.u32 %v1780, %v1781
  %v1783 = vsub.s32 4294967266, %v1778
  %v1784 = vadd.s32 %v1783, 127
  %v1785 = vshll.u32 %v1784, 23
  %v1786 = vor.u32 4788187, %v1785
  %v1787 = vand.u32 2147483647, %v1786
  %v1789 = vcvt.s32.f32 %v1782
  %v1790 = vmul.f32 %v1789, %v1787
  %v1791 = vxor.u32 %v1790, 2147483648
  %v1792 = vsel %vm1709, %v1791, %v1790
  %v1793 = vsub.s32 4, %v1769
  %v1794 = vsel %vm1709, %v1793, %v1769
  %v1795 = vsel %vm1708, %v1119, %v1792
  %v1796 = vsel %vm1708, 0, %v1794
  %v1797 = vcosq.f32.pop %v1795
  %v1798 = vsinq.f32.pop %v1795
  %vm1799 = vweird.f32 %v1119
  %v1800 = vadd.s32 %v1796, 3
  %v1801 = vand.u32 %v1800, 3
  %vm1802 = vcmp.lt.s32.totalorder %v1801, 2
  %vm1803 = vcmp.eq.s32.totalorder %v1801, 0
  %v1804 = vxor.u32 %v1798, 2147483648
  %v1805 = vsel %vm1803, %v1797, %v1804
  %vm1806 = vcmp.eq.s32.totalorder %v1801, 2
  %v1807 = vxor.u32 %v1797, 2147483648
  %v1808 = vsel %vm1806, %v1807, %v1798
  %v1809 = vsel %vm1802, %v1805, %v1808
  %v1810 = vsel %vm1799, nan, %v1809
  %v1811 = vand.u32 2147483647, %v1125
  %vm1812 = vcmp.le.f32.partialorder %v1811, 0.7853982
  %vm1813 = vcmp.lt.s32.totalorder %v1125, 0
  %v1814 = vand.u32 %v1125, 2139095040
  %v1815 = vshrl.u32 %v1814, 23
  %v1816 = vsub.s32 %v1815, 127
  %v1817 = vand.u32 2147483647, %v1125
  %v1818 = vand.u32 %v1817, 8388607
  %v1819 = vor.u32 %v1818, 8388608
  %v1820 = vsub.s32 0, %v1819
  %v1821 = vadd.s32 %v1816, 1
  %vm1822 = vcmp.gt.s32.totalorder %v1821, 0
  %v1823 = vsel %vm1822, %v1821, 0
  %v1824 = vshrl.u32 %v1823, 5
  %v1825 = vand.u32 %v1823, 31
  %v1826 = vsub.s32 32, %v1825
  %v1827 = vshrl.u32 683565275, %v1826
  %v1828 = vshll.u32 683565275, %v1825
  %v1829 = vshrl.u32 2475754826, %v1826
  %v1830 = vor.u32 %v1828, %v1829
  %v1831 = vshll.u32 2475754826, %v1825
  %v1832 = vshrl.u32 2131351028, %v1826
  %v1833 = vor.u32 %v1831, %v1832
  %v1834 = vshll.u32 2131351028, %v1825
  %v1835 = vshrl.u32 2102212464, %v1826
  %v1836 = vor.u32 %v1834, %v1835
  %v1837 = vshll.u32 2102212464, %v1825
  %v1838 = vshrl.u32 920167782, %v1826
  %v1839 = vor.u32 %v1837, %v1838
  %v1840 = vshll.u32 920167782, %v1825
  %v1841 = vshrl.u32 1326507024, %v1826
  %v1842 = vor.u32 %v1840, %v1841
  %vm1843 = vcmp.lt.s32.totalorder %v1824, 1
  %vm1844 = vcmp.lt.s32.totalorder %v1824, 2
  %vm1845 = vcmp.lt.s32.totalorder %v1824, 3
  %vm1846 = vcmp.lt.s32.totalorder %v1824, 4
  %v1847 = vsel %vm1843, %v1827, %v1830
  %v1848 = vsel %vm1846, %v1836, 2102212464
  %v1849 = vsel %vm1845, %v1833, %v1848
  %v1850 = vsel %vm1844, %v1847, %v1849
  %v1851 = vsel %vm1843, %v1830, %v1833
  %v1852 = vsel %vm1846, %v1839, 920167782
  %v1853 = vsel %vm1845, %v1836, %v1852
  %v1854 = vsel %vm1844, %v1851, %v1853
  %v1855 = vsel %vm1843, %v1833, %v1836
  %v1856 = vsel %vm1846, %v1842, 1326507024
  %v1857 = vsel %vm1845, %v1839, %v1856
  %v1858 = vsel %vm1844, %v1855, %v1857
  %v1859 = vshll.u32 %v1819, 8
  %v1860 = vmul.u32.u64.compose %v1859, %v1858
  %v1861 = vextract.low.u32 %v1860
  %v1862 = vextract.high.u32 %v1860
  %v1863 = vmul.u32.u64.compose %v1859, %v1854
  %v1864 = vextract.low.u32 %v1863
  %v1865 = vextract.high.u32 %v1863
  %v1866 = vmul.u32 %v1859, %v1850
  %v1867 = vadd.s32 %v1862, %v1864
  %vm1868 = vc.u32 %v1862, %v1864
  %v1869 = vadd.s32 %v1865, 1
  %v1870 = vsel %vm1868, %v1869, %v1865
  %v1871 = vadd.s32 %v1866, %v1870
  %v1872 = vadd.s32 %v1871, 536870912
  %v1873 = vshrl.u32 %v1872, 30
  %v1874 = vshll.u32 %v1873, 30
  %v1875 = vsub.s32 %v1871, %v1874
  %vm1876 = vcmp.lt.s32.totalorder %v1875, 0
  %v1877 = vsub.s32 0, %v1875
  %v1878 = vsel %vm1876, %v1877, %v1875
  %v1879 = vclz %v1878
  %v1880 = vsub.s32 %v1879, 2
  %vm1881 = vcmp.gt.s32.totalorder 0, %v1880
  %v1882 = vsel %vm1881, 0, %v1880
  %v1883 = vsub.s32 32, %v1882
  %v1884 = vshll.u32 %v1875, %v1882
  %v1885 = vshrl.u32 %v1867, %v1883
  %v1886 = vor.u32 %v1884, %v1885
  %v1887 = vsub.s32 4294967266, %v1882
  %v1888 = vadd.s32 %v1887, 127
  %v1889 = vshll.u32 %v1888, 23
  %v1890 = vor.u32 4788187, %v1889
  %v1891 = vand.u32 2147483647, %v1890
  %v1893 = vcvt.s32.f32 %v1886
  %v1894 = vmul.f32 %v1893, %v1891
  %v1895 = vxor.u32 %v1894, 2147483648
  %v1896 = vsel %vm1813, %v1895, %v1894
  %v1897 = vsub.s32 4, %v1873
  %v1898 = vsel %vm1813, %v1897, %v1873
  %v1899 = vsel %vm1812, %v1125, %v1896
  %v1900 = vsel %vm1812, 0, %v1898
  %v1901 = vcosq.f32.pop %v1899
  %v1902 = vsinq.f32.pop %v1899
  %vm1903 = vweird.f32 %v1125
  %v1904 = vadd.s32 %v1900, 3
  %v1905 = vand.u32 %v1904, 3
  %vm1906 = vcmp.lt.s32.totalorder %v1905, 2
  %vm1907 = vcmp.eq.s32.totalorder %v1905, 0
  %v1908 = vxor.u32 %v1902, 2147483648
  %v1909 = vsel %vm1907, %v1901, %v1908
  %vm1910 = vcmp.eq.s32.totalorder %v1905, 2
  %v1911 = vxor.u32 %v1901, 2147483648
  %v1912 = vsel %vm1910, %v1911, %v1902
  %v1913 = vsel %vm1906, %v1909, %v1912
  %v1914 = vsel %vm1903, nan, %v1913
  %v1915 = vand.u32 2147483647, %v1131
  %vm1916 = vcmp.le.f32.partialorder %v1915, 0.7853982
  %vm1917 = vcmp.lt.s32.totalorder %v1131, 0
  %v1918 = vand.u32 %v1131, 2139095040
  %v1919 = vshrl.u32 %v1918, 23
  %v1920 = vsub.s32 %v1919, 127
  %v1921 = vand.u32 2147483647, %v1131
  %v1922 = vand.u32 %v1921, 8388607
  %v1923 = vor.u32 %v1922, 8388608
  %v1924 = vsub.s32 0, %v1923
  %v1925 = vadd.s32 %v1920, 1
  %vm1926 = vcmp.gt.s32.totalorder %v1925, 0
  %v1927 = vsel %vm1926, %v1925, 0
  %v1928 = vshrl.u32 %v1927, 5
  %v1929 = vand.u32 %v1927, 31
  %v1930 = vsub.s32 32, %v1929
  %v1931 = vshrl.u32 683565275, %v1930
  %v1932 = vshll.u32 683565275, %v1929
  %v1933 = vshrl.u32 2475754826, %v1930
  %v1934 = vor.u32 %v1932, %v1933
  %v1935 = vshll.u32 2475754826, %v1929
  %v1936 = vshrl.u32 2131351028, %v1930
  %v1937 = vor.u32 %v1935, %v1936
  %v1938 = vshll.u32 2131351028, %v1929
  %v1939 = vshrl.u32 2102212464, %v1930
  %v1940 = vor.u32 %v1938, %v1939
  %v1941 = vshll.u32 2102212464, %v1929
  %v1942 = vshrl.u32 920167782, %v1930
  %v1943 = vor.u32 %v1941, %v1942
  %v1944 = vshll.u32 920167782, %v1929
  %v1945 = vshrl.u32 1326507024, %v1930
  %v1946 = vor.u32 %v1944, %v1945
  %vm1947 = vcmp.lt.s32.totalorder %v1928, 1
  %vm1948 = vcmp.lt.s32.totalorder %v1928, 2
  %vm1949 = vcmp.lt.s32.totalorder %v1928, 3
  %vm1950 = vcmp.lt.s32.totalorder %v1928, 4
  %v1951 = vsel %vm1947, %v1931, %v1934
  %v1952 = vsel %vm1950, %v1940, 2102212464
  %v1953 = vsel %vm1949, %v1937, %v1952
  %v1954 = vsel %vm1948, %v1951, %v1953
  %v1955 = vsel %vm1947, %v1934, %v1937
  %v1956 = vsel %vm1950, %v1943, 920167782
  %v1957 = vsel %vm1949, %v1940, %v1956
  %v1958 = vsel %vm1948, %v1955, %v1957
  %v1959 = vsel %vm1947, %v1937, %v1940
  %v1960 = vsel %vm1950, %v1946, 1326507024
  %v1961 = vsel %vm1949, %v1943, %v1960
  %v1962 = vsel %vm1948, %v1959, %v1961
  %v1963 = vshll.u32 %v1923, 8
  %v1964 = vmul.u32.u64.compose %v1963, %v1962
  %v1965 = vextract.low.u32 %v1964
  %v1966 = vextract.high.u32 %v1964
  %v1967 = vmul.u32.u64.compose %v1963, %v1958
  %v1968 = vextract.low.u32 %v1967
  %v1969 = vextract.high.u32 %v1967
  %v1970 = vmul.u32 %v1963, %v1954
  %v1971 = vadd.s32 %v1966, %v1968
  %vm1972 = vc.u32 %v1966, %v1968
  %v1973 = vadd.s32 %v1969, 1
  %v1974 = vsel %vm1972, %v1973, %v1969
  %v1975 = vadd.s32 %v1970, %v1974
  %v1976 = vadd.s32 %v1975, 536870912
  %v1977 = vshrl.u32 %v1976, 30
  %v1978 = vshll.u32 %v1977, 30
  %v1979 = vsub.s32 %v1975, %v1978
  %vm1980 = vcmp.lt.s32.totalorder %v1979, 0
  %v1981 = vsub.s32 0, %v1979
  %v1982 = vsel %vm1980, %v1981, %v1979
  %v1983 = vclz %v1982
  %v1984 = vsub.s32 %v1983, 2
  %vm1985 = vcmp.gt.s32.totalorder 0, %v1984
  %v1986 = vsel %vm1985, 0, %v1984
  %v1987 = vsub.s32 32, %v1986
  %v1988 = vshll.u32 %v1979, %v1986
  %v1989 = vshrl.u32 %v1971, %v1987
  %v1990 = vor.u32 %v1988, %v1989
  %v1991 = vsub.s32 4294967266, %v1986
  %v1992 = vadd.s32 %v1991, 127
  %v1993 = vshll.u32 %v1992, 23
  %v1994 = vor.u32 4788187, %v1993
  %v1995 = vand.u32 2147483647, %v1994
  %v1997 = vcvt.s32.f32 %v1990
  %v1998 = vmul.f32 %v1997, %v1995
  %v1999 = vxor.u32 %v1998, 2147483648
  %v2000 = vsel %vm1917, %v1999, %v1998
  %v2001 = vsub.s32 4, %v1977
  %v2002 = vsel %vm1917, %v2001, %v1977
  %v2003 = vsel %vm1916, %v1131, %v2000
  %v2004 = vsel %vm1916, 0, %v2002
  %v2005 = vcosq.f32.pop %v2003
  %v2006 = vsinq.f32.pop %v2003
  %vm2007 = vweird.f32 %v1131
  %v2008 = vadd.s32 %v2004, 3
  %v2009 = vand.u32 %v2008, 3
  %vm2010 = vcmp.lt.s32.totalorder %v2009, 2
  %vm2011 = vcmp.eq.s32.totalorder %v2009, 0
  %v2012 = vxor.u32 %v2006, 2147483648
  %v2013 = vsel %vm2011, %v2005, %v2012
  %vm2014 = vcmp.eq.s32.totalorder %v2009, 2
  %v2015 = vxor.u32 %v2005, 2147483648
  %v2016 = vsel %vm2014, %v2015, %v2006
  %v2017 = vsel %vm2010, %v2013, %v2016
  %v2018 = vsel %vm2007, nan, %v2017
  %v2019 = vand.u32 2147483647, %v1137
  %vm2020 = vcmp.le.f32.partialorder %v2019, 0.7853982
  %vm2021 = vcmp.lt.s32.totalorder %v1137, 0
  %v2022 = vand.u32 %v1137, 2139095040
  %v2023 = vshrl.u32 %v2022, 23
  %v2024 = vsub.s32 %v2023, 127
  %v2025 = vand.u32 2147483647, %v1137
  %v2026 = vand.u32 %v2025, 8388607
  %v2027 = vor.u32 %v2026, 8388608
  %v2028 = vsub.s32 0, %v2027
  %v2029 = vadd.s32 %v2024, 1
  %vm2030 = vcmp.gt.s32.totalorder %v2029, 0
  %v2031 = vsel %vm2030, %v2029, 0
  %v2032 = vshrl.u32 %v2031, 5
  %v2033 = vand.u32 %v2031, 31
  %v2034 = vsub.s32 32, %v2033
  %v2035 = vshrl.u32 683565275, %v2034
  %v2036 = vshll.u32 683565275, %v2033
  %v2037 = vshrl.u32 2475754826, %v2034
  %v2038 = vor.u32 %v2036, %v2037
  %v2039 = vshll.u32 2475754826, %v2033
  %v2040 = vshrl.u32 2131351028, %v2034
  %v2041 = vor.u32 %v2039, %v2040
  %v2042 = vshll.u32 2131351028, %v2033
  %v2043 = vshrl.u32 2102212464, %v2034
  %v2044 = vor.u32 %v2042, %v2043
  %v2045 = vshll.u32 2102212464, %v2033
  %v2046 = vshrl.u32 920167782, %v2034
  %v2047 = vor.u32 %v2045, %v2046
  %v2048 = vshll.u32 920167782, %v2033
  %v2049 = vshrl.u32 1326507024, %v2034
  %v2050 = vor.u32 %v2048, %v2049
  %vm2051 = vcmp.lt.s32.totalorder %v2032, 1
  %vm2052 = vcmp.lt.s32.totalorder %v2032, 2
  %vm2053 = vcmp.lt.s32.totalorder %v2032, 3
  %vm2054 = vcmp.lt.s32.totalorder %v2032, 4
  %v2055 = vsel %vm2051, %v2035, %v2038
  %v2056 = vsel %vm2054, %v2044, 2102212464
  %v2057 = vsel %vm2053, %v2041, %v2056
  %v2058 = vsel %vm2052, %v2055, %v2057
  %v2059 = vsel %vm2051, %v2038, %v2041
  %v2060 = vsel %vm2054, %v2047, 920167782
  %v2061 = vsel %vm2053, %v2044, %v2060
  %v2062 = vsel %vm2052, %v2059, %v2061
  %v2063 = vsel %vm2051, %v2041, %v2044
  %v2064 = vsel %vm2054, %v2050, 1326507024
  %v2065 = vsel %vm2053, %v2047, %v2064
  %v2066 = vsel %vm2052, %v2063, %v2065
  %v2067 = vshll.u32 %v2027, 8
  %v2068 = vmul.u32.u64.compose %v2067, %v2066
  %v2069 = vextract.low.u32 %v2068
  %v2070 = vextract.high.u32 %v2068
  %v2071 = vmul.u32.u64.compose %v2067, %v2062
  %v2072 = vextract.low.u32 %v2071
  %v2073 = vextract.high.u32 %v2071
  %v2074 = vmul.u32 %v2067, %v2058
  %v2075 = vadd.s32 %v2070, %v2072
  %vm2076 = vc.u32 %v2070, %v2072
  %v2077 = vadd.s32 %v2073, 1
  %v2078 = vsel %vm2076, %v2077, %v2073
  %v2079 = vadd.s32 %v2074, %v2078
  %v2080 = vadd.s32 %v2079, 536870912
  %v2081 = vshrl.u32 %v2080, 30
  %v2082 = vshll.u32 %v2081, 30
  %v2083 = vsub.s32 %v2079, %v2082
  %vm2084 = vcmp.lt.s32.totalorder %v2083, 0
  %v2085 = vsub.s32 0, %v2083
  %v2086 = vsel %vm2084, %v2085, %v2083
  %v2087 = vclz %v2086
  %v2088 = vsub.s32 %v2087, 2
  %vm2089 = vcmp.gt.s32.totalorder 0, %v2088
  %v2090 = vsel %vm2089, 0, %v2088
  %v2091 = vsub.s32 32, %v2090
  %v2092 = vshll.u32 %v2083, %v2090
  %v2093 = vshrl.u32 %v2075, %v2091
  %v2094 = vor.u32 %v2092, %v2093
  %v2095 = vsub.s32 4294967266, %v2090
  %v2096 = vadd.s32 %v2095, 127
  %v2097 = vshll.u32 %v2096, 23
  %v2098 = vor.u32 4788187, %v2097
  %v2099 = vand.u32 2147483647, %v2098
  %v2101 = vcvt.s32.f32 %v2094
  %v2102 = vmul.f32 %v2101, %v2099
  %v2103 = vxor.u32 %v2102, 2147483648
  %v2104 = vsel %vm2021, %v2103, %v2102
  %v2105 = vsub.s32 4, %v2081
  %v2106 = vsel %vm2021, %v2105, %v2081
  %v2107 = vsel %vm2020, %v1137, %v2104
  %v2108 = vsel %vm2020, 0, %v2106
  %v2109 = vcosq.f32.pop %v2107
  %v2110 = vsinq.f32.pop %v2107
  %vm2111 = vweird.f32 %v1137
  %v2112 = vadd.s32 %v2108, 3
  %v2113 = vand.u32 %v2112, 3
  %vm2114 = vcmp.lt.s32.totalorder %v2113, 2
  %vm2115 = vcmp.eq.s32.totalorder %v2113, 0
  %v2116 = vxor.u32 %v2110, 2147483648
  %v2117 = vsel %vm2115, %v2109, %v2116
  %vm2118 = vcmp.eq.s32.totalorder %v2113, 2
  %v2119 = vxor.u32 %v2109, 2147483648
  %v2120 = vsel %vm2118, %v2119, %v2110
  %v2121 = vsel %vm2114, %v2117, %v2120
  %v2122 = vsel %vm2111, nan, %v2121
  %v2123 = vand.u32 2147483647, %v1143
  %vm2124 = vcmp.le.f32.partialorder %v2123, 0.7853982
  %vm2125 = vcmp.lt.s32.totalorder %v1143, 0
  %v2126 = vand.u32 %v1143, 2139095040
  %v2127 = vshrl.u32 %v2126, 23
  %v2128 = vsub.s32 %v2127, 127
  %v2129 = vand.u32 2147483647, %v1143
  %v2130 = vand.u32 %v2129, 8388607
  %v2131 = vor.u32 %v2130, 8388608
  %v2132 = vsub.s32 0, %v2131
  %v2133 = vadd.s32 %v2128, 1
  %vm2134 = vcmp.gt.s32.totalorder %v2133, 0
  %v2135 = vsel %vm2134, %v2133, 0
  %v2136 = vshrl.u32 %v2135, 5
  %v2137 = vand.u32 %v2135, 31
  %v2138 = vsub.s32 32, %v2137
  %v2139 = vshrl.u32 683565275, %v2138
  %v2140 = vshll.u32 683565275, %v2137
  %v2141 = vshrl.u32 2475754826, %v2138
  %v2142 = vor.u32 %v2140, %v2141
  %v2143 = vshll.u32 2475754826, %v2137
  %v2144 = vshrl.u32 2131351028, %v2138
  %v2145 = vor.u32 %v2143, %v2144
  %v2146 = vshll.u32 2131351028, %v2137
  %v2147 = vshrl.u32 2102212464, %v2138
  %v2148 = vor.u32 %v2146, %v2147
  %v2149 = vshll.u32 2102212464, %v2137
  %v2150 = vshrl.u32 920167782, %v2138
  %v2151 = vor.u32 %v2149, %v2150
  %v2152 = vshll.u32 920167782, %v2137
  %v2153 = vshrl.u32 1326507024, %v2138
  %v2154 = vor.u32 %v2152, %v2153
  %vm2155 = vcmp.lt.s32.totalorder %v2136, 1
  %vm2156 = vcmp.lt.s32.totalorder %v2136, 2
  %vm2157 = vcmp.lt.s32.totalorder %v2136, 3
  %vm2158 = vcmp.lt.s32.totalorder %v2136, 4
  %v2159 = vsel %vm2155, %v2139, %v2142
  %v2160 = vsel %vm2158, %v2148, 2102212464
  %v2161 = vsel %vm2157, %v2145, %v2160
  %v2162 = vsel %vm2156, %v2159, %v2161
  %v2163 = vsel %vm2155, %v2142, %v2145
  %v2164 = vsel %vm2158, %v2151, 920167782
  %v2165 = vsel %vm2157, %v2148, %v2164
  %v2166 = vsel %vm2156, %v2163, %v2165
  %v2167 = vsel %vm2155, %v2145, %v2148
  %v2168 = vsel %vm2158, %v2154, 1326507024
  %v2169 = vsel %vm2157, %v2151, %v2168
  %v2170 = vsel %vm2156, %v2167, %v2169
  %v2171 = vshll.u32 %v2131, 8
  %v2172 = vmul.u32.u64.compose %v2171, %v2170
  %v2173 = vextract.low.u32 %v2172
  %v2174 = vextract.high.u32 %v2172
  %v2175 = vmul.u32.u64.compose %v2171, %v2166
  %v2176 = vextract.low.u32 %v2175
  %v2177 = vextract.high.u32 %v2175
  %v2178 = vmul.u32 %v2171, %v2162
  %v2179 = vadd.s32 %v2174, %v2176
  %vm2180 = vc.u32 %v2174, %v2176
  %v2181 = vadd.s32 %v2177, 1
  %v2182 = vsel %vm2180, %v2181, %v2177
  %v2183 = vadd.s32 %v2178, %v2182
  %v2184 = vadd.s32 %v2183, 536870912
  %v2185 = vshrl.u32 %v2184, 30
  %v2186 = vshll.u32 %v2185, 30
  %v2187 = vsub.s32 %v2183, %v2186
  %vm2188 = vcmp.lt.s32.totalorder %v2187, 0
  %v2189 = vsub.s32 0, %v2187
  %v2190 = vsel %vm2188, %v2189, %v2187
  %v2191 = vclz %v2190
  %v2192 = vsub.s32 %v2191, 2
  %vm2193 = vcmp.gt.s32.totalorder 0, %v2192
  %v2194 = vsel %vm2193, 0, %v2192
  %v2195 = vsub.s32 32, %v2194
  %v2196 = vshll.u32 %v2187, %v2194
  %v2197 = vshrl.u32 %v2179, %v2195
  %v2198 = vor.u32 %v2196, %v2197
  %v2199 = vsub.s32 4294967266, %v2194
  %v2200 = vadd.s32 %v2199, 127
  %v2201 = vshll.u32 %v2200, 23
  %v2202 = vor.u32 4788187, %v2201
  %v2203 = vand.u32 2147483647, %v2202
  %v2205 = vcvt.s32.f32 %v2198
  %v2206 = vmul.f32 %v2205, %v2203
  %v2207 = vxor.u32 %v2206, 2147483648
  %v2208 = vsel %vm2125, %v2207, %v2206
  %v2209 = vsub.s32 4, %v2185
  %v2210 = vsel %vm2125, %v2209, %v2185
  %v2211 = vsel %vm2124, %v1143, %v2208
  %v2212 = vsel %vm2124, 0, %v2210
  %v2213 = vcosq.f32.pop %v2211
  %v2214 = vsinq.f32.pop %v2211
  %vm2215 = vweird.f32 %v1143
  %v2216 = vadd.s32 %v2212, 3
  %v2217 = vand.u32 %v2216, 3
  %vm2218 = vcmp.lt.s32.totalorder %v2217, 2
  %vm2219 = vcmp.eq.s32.totalorder %v2217, 0
  %v2220 = vxor.u32 %v2214, 2147483648
  %v2221 = vsel %vm2219, %v2213, %v2220
  %vm2222 = vcmp.eq.s32.totalorder %v2217, 2
  %v2223 = vxor.u32 %v2213, 2147483648
  %v2224 = vsel %vm2222, %v2223, %v2214
  %v2225 = vsel %vm2218, %v2221, %v2224
  %v2226 = vsel %vm2215, nan, %v2225
  %v2227 = vand.u32 2147483647, %v1149
  %vm2228 = vcmp.le.f32.partialorder %v2227, 0.7853982
  %vm2229 = vcmp.lt.s32.totalorder %v1149, 0
  %v2230 = vand.u32 %v1149, 2139095040
  %v2231 = vshrl.u32 %v2230, 23
  %v2232 = vsub.s32 %v2231, 127
  %v2233 = vand.u32 2147483647, %v1149
  %v2234 = vand.u32 %v2233, 8388607
  %v2235 = vor.u32 %v2234, 8388608
  %v2236 = vsub.s32 0, %v2235
  %v2237 = vadd.s32 %v2232, 1
  %vm2238 = vcmp.gt.s32.totalorder %v2237, 0
  %v2239 = vsel %vm2238, %v2237, 0
  %v2240 = vshrl.u32 %v2239, 5
  %v2241 = vand.u32 %v2239, 31
  %v2242 = vsub.s32 32, %v2241
  %v2243 = vshrl.u32 683565275, %v2242
  %v2244 = vshll.u32 683565275, %v2241
  %v2245 = vshrl.u32 2475754826, %v2242
  %v2246 = vor.u32 %v2244, %v2245
  %v2247 = vshll.u32 2475754826, %v2241
  %v2248 = vshrl.u32 2131351028, %v2242
  %v2249 = vor.u32 %v2247, %v2248
  %v2250 = vshll.u32 2131351028, %v2241
  %v2251 = vshrl.u32 2102212464, %v2242
  %v2252 = vor.u32 %v2250, %v2251
  %v2253 = vshll.u32 2102212464, %v2241
  %v2254 = vshrl.u32 920167782, %v2242
  %v2255 = vor.u32 %v2253, %v2254
  %v2256 = vshll.u32 920167782, %v2241
  %v2257 = vshrl.u32 1326507024, %v2242
  %v2258 = vor.u32 %v2256, %v2257
  %vm2259 = vcmp.lt.s32.totalorder %v2240, 1
  %vm2260 = vcmp.lt.s32.totalorder %v2240, 2
  %vm2261 = vcmp.lt.s32.totalorder %v2240, 3
  %vm2262 = vcmp.lt.s32.totalorder %v2240, 4
  %v2263 = vsel %vm2259, %v2243, %v2246
  %v2264 = vsel %vm2262, %v2252, 2102212464
  %v2265 = vsel %vm2261, %v2249, %v2264
  %v2266 = vsel %vm2260, %v2263, %v2265
  %v2267 = vsel %vm2259, %v2246, %v2249
  %v2268 = vsel %vm2262, %v2255, 920167782
  %v2269 = vsel %vm2261, %v2252, %v2268
  %v2270 = vsel %vm2260, %v2267, %v2269
  %v2271 = vsel %vm2259, %v2249, %v2252
  %v2272 = vsel %vm2262, %v2258, 1326507024
  %v2273 = vsel %vm2261, %v2255, %v2272
  %v2274 = vsel %vm2260, %v2271, %v2273
  %v2275 = vshll.u32 %v2235, 8
  %v2276 = vmul.u32.u64.compose %v2275, %v2274
  %v2277 = vextract.low.u32 %v2276
  %v2278 = vextract.high.u32 %v2276
  %v2279 = vmul.u32.u64.compose %v2275, %v2270
  %v2280 = vextract.low.u32 %v2279
  %v2281 = vextract.high.u32 %v2279
  %v2282 = vmul.u32 %v2275, %v2266
  %v2283 = vadd.s32 %v2278, %v2280
  %vm2284 = vc.u32 %v2278, %v2280
  %v2285 = vadd.s32 %v2281, 1
  %v2286 = vsel %vm2284, %v2285, %v2281
  %v2287 = vadd.s32 %v2282, %v2286
  %v2288 = vadd.s32 %v2287, 536870912
  %v2289 = vshrl.u32 %v2288, 30
  %v2290 = vshll.u32 %v2289, 30
  %v2291 = vsub.s32 %v2287, %v2290
  %vm2292 = vcmp.lt.s32.totalorder %v2291, 0
  %v2293 = vsub.s32 0, %v2291
  %v2294 = vsel %vm2292, %v2293, %v2291
  %v2295 = vclz %v2294
  %v2296 = vsub.s32 %v2295, 2
  %vm2297 = vcmp.gt.s32.totalorder 0, %v2296
  %v2298 = vsel %vm2297, 0, %v2296
  %v2299 = vsub.s32 32, %v2298
  %v2300 = vshll.u32 %v2291, %v2298
  %v2301 = vshrl.u32 %v2283, %v2299
  %v2302 = vor.u32 %v2300, %v2301
  %v2303 = vsub.s32 4294967266, %v2298
  %v2304 = vadd.s32 %v2303, 127
  %v2305 = vshll.u32 %v2304, 23
  %v2306 = vor.u32 4788187, %v2305
  %v2307 = vand.u32 2147483647, %v2306
  %v2309 = vcvt.s32.f32 %v2302
  %v2310 = vmul.f32 %v2309, %v2307
  %v2311 = vxor.u32 %v2310, 2147483648
  %v2312 = vsel %vm2229, %v2311, %v2310
  %v2313 = vsub.s32 4, %v2289
  %v2314 = vsel %vm2229, %v2313, %v2289
  %v2315 = vsel %vm2228, %v1149, %v2312
  %v2316 = vsel %vm2228, 0, %v2314
  %v2317 = vcosq.f32.pop %v2315
  %v2318 = vsinq.f32.pop %v2315
  %vm2319 = vweird.f32 %v1149
  %v2320 = vadd.s32 %v2316, 3
  %v2321 = vand.u32 %v2320, 3
  %vm2322 = vcmp.lt.s32.totalorder %v2321, 2
  %vm2323 = vcmp.eq.s32.totalorder %v2321, 0
  %v2324 = vxor.u32 %v2318, 2147483648
  %v2325 = vsel %vm2323, %v2317, %v2324
  %vm2326 = vcmp.eq.s32.totalorder %v2321, 2
  %v2327 = vxor.u32 %v2317, 2147483648
  %v2328 = vsel %vm2326, %v2327, %v2318
  %v2329 = vsel %vm2322, %v2325, %v2328
  %v2330 = vsel %vm2319, nan, %v2329
  %v2331 = vand.u32 2147483647, %v1155
  %vm2332 = vcmp.le.f32.partialorder %v2331, 0.7853982
  %vm2333 = vcmp.lt.s32.totalorder %v1155, 0
  %v2334 = vand.u32 %v1155, 2139095040
  %v2335 = vshrl.u32 %v2334, 23
  %v2336 = vsub.s32 %v2335, 127
  %v2337 = vand.u32 2147483647, %v1155
  %v2338 = vand.u32 %v2337, 8388607
  %v2339 = vor.u32 %v2338, 8388608
  %v2340 = vsub.s32 0, %v2339
  %v2341 = vadd.s32 %v2336, 1
  %vm2342 = vcmp.gt.s32.totalorder %v2341, 0
  %v2343 = vsel %vm2342, %v2341, 0
  %v2344 = vshrl.u32 %v2343, 5
  %v2345 = vand.u32 %v2343, 31
  %v2346 = vsub.s32 32, %v2345
  %v2347 = vshrl.u32 683565275, %v2346
  %v2348 = vshll.u32 683565275, %v2345
  %v2349 = vshrl.u32 2475754826, %v2346
  %v2350 = vor.u32 %v2348, %v2349
  %v2351 = vshll.u32 2475754826, %v2345
  %v2352 = vshrl.u32 2131351028, %v2346
  %v2353 = vor.u32 %v2351, %v2352
  %v2354 = vshll.u32 2131351028, %v2345
  %v2355 = vshrl.u32 2102212464, %v2346
  %v2356 = vor.u32 %v2354, %v2355
  %v2357 = vshll.u32 2102212464, %v2345
  %v2358 = vshrl.u32 920167782, %v2346
  %v2359 = vor.u32 %v2357, %v2358
  %v2360 = vshll.u32 920167782, %v2345
  %v2361 = vshrl.u32 1326507024, %v2346
  %v2362 = vor.u32 %v2360, %v2361
  %vm2363 = vcmp.lt.s32.totalorder %v2344, 1
  %vm2364 = vcmp.lt.s32.totalorder %v2344, 2
  %vm2365 = vcmp.lt.s32.totalorder %v2344, 3
  %vm2366 = vcmp.lt.s32.totalorder %v2344, 4
  %v2367 = vsel %vm2363, %v2347, %v2350
  %v2368 = vsel %vm2366, %v2356, 2102212464
  %v2369 = vsel %vm2365, %v2353, %v2368
  %v2370 = vsel %vm2364, %v2367, %v2369
  %v2371 = vsel %vm2363, %v2350, %v2353
  %v2372 = vsel %vm2366, %v2359, 920167782
  %v2373 = vsel %vm2365, %v2356, %v2372
  %v2374 = vsel %vm2364, %v2371, %v2373
  %v2375 = vsel %vm2363, %v2353, %v2356
  %v2376 = vsel %vm2366, %v2362, 1326507024
  %v2377 = vsel %vm2365, %v2359, %v2376
  %v2378 = vsel %vm2364, %v2375, %v2377
  %v2379 = vshll.u32 %v2339, 8
  %v2380 = vmul.u32.u64.compose %v2379, %v2378
  %v2381 = vextract.low.u32 %v2380
  %v2382 = vextract.high.u32 %v2380
  %v2383 = vmul.u32.u64.compose %v2379, %v2374
  %v2384 = vextract.low.u32 %v2383
  %v2385 = vextract.high.u32 %v2383
  %v2386 = vmul.u32 %v2379, %v2370
  %v2387 = vadd.s32 %v2382, %v2384
  %vm2388 = vc.u32 %v2382, %v2384
  %v2389 = vadd.s32 %v2385, 1
  %v2390 = vsel %vm2388, %v2389, %v2385
  %v2391 = vadd.s32 %v2386, %v2390
  %v2392 = vadd.s32 %v2391, 536870912
  %v2393 = vshrl.u32 %v2392, 30
  %v2394 = vshll.u32 %v2393, 30
  %v2395 = vsub.s32 %v2391, %v2394
  %vm2396 = vcmp.lt.s32.totalorder %v2395, 0
  %v2397 = vsub.s32 0, %v2395
  %v2398 = vsel %vm2396, %v2397, %v2395
  %v2399 = vclz %v2398
  %v2400 = vsub.s32 %v2399, 2
  %vm2401 = vcmp.gt.s32.totalorder 0, %v2400
  %v2402 = vsel %vm2401, 0, %v2400
  %v2403 = vsub.s32 32, %v2402
  %v2404 = vshll.u32 %v2395, %v2402
  %v2405 = vshrl.u32 %v2387, %v2403
  %v2406 = vor.u32 %v2404, %v2405
  %v2407 = vsub.s32 4294967266, %v2402
  %v2408 = vadd.s32 %v2407, 127
  %v2409 = vshll.u32 %v2408, 23
  %v2410 = vor.u32 4788187, %v2409
  %v2411 = vand.u32 2147483647, %v2410
  %v2413 = vcvt.s32.f32 %v2406
  %v2414 = vmul.f32 %v2413, %v2411
  %v2415 = vxor.u32 %v2414, 2147483648
  %v2416 = vsel %vm2333, %v2415, %v2414
  %v2417 = vsub.s32 4, %v2393
  %v2418 = vsel %vm2333, %v2417, %v2393
  %v2419 = vsel %vm2332, %v1155, %v2416
  %v2420 = vsel %vm2332, 0, %v2418
  %v2421 = vcosq.f32.pop %v2419
  %v2422 = vsinq.f32.pop %v2419
  %vm2423 = vweird.f32 %v1155
  %v2424 = vadd.s32 %v2420, 3
  %v2425 = vand.u32 %v2424, 3
  %vm2426 = vcmp.lt.s32.totalorder %v2425, 2
  %vm2427 = vcmp.eq.s32.totalorder %v2425, 0
  %v2428 = vxor.u32 %v2422, 2147483648
  %v2429 = vsel %vm2427, %v2421, %v2428
  %vm2430 = vcmp.eq.s32.totalorder %v2425, 2
  %v2431 = vxor.u32 %v2421, 2147483648
  %v2432 = vsel %vm2430, %v2431, %v2422
  %v2433 = vsel %vm2426, %v2429, %v2432
  %v2434 = vsel %vm2423, nan, %v2433
  %v2435 = vand.u32 2147483647, %v1161
  %vm2436 = vcmp.le.f32.partialorder %v2435, 0.7853982
  %vm2437 = vcmp.lt.s32.totalorder %v1161, 0
  %v2438 = vand.u32 %v1161, 2139095040
  %v2439 = vshrl.u32 %v2438, 23
  %v2440 = vsub.s32 %v2439, 127
  %v2441 = vand.u32 2147483647, %v1161
  %v2442 = vand.u32 %v2441, 8388607
  %v2443 = vor.u32 %v2442, 8388608
  %v2444 = vsub.s32 0, %v2443
  %v2445 = vadd.s32 %v2440, 1
  %vm2446 = vcmp.gt.s32.totalorder %v2445, 0
  %v2447 = vsel %vm2446, %v2445, 0
  %v2448 = vshrl.u32 %v2447, 5
  %v2449 = vand.u32 %v2447, 31
  %v2450 = vsub.s32 32, %v2449
  %v2451 = vshrl.u32 683565275, %v2450
  %v2452 = vshll.u32 683565275, %v2449
  %v2453 = vshrl.u32 2475754826, %v2450
  %v2454 = vor.u32 %v2452, %v2453
  %v2455 = vshll.u32 2475754826, %v2449
  %v2456 = vshrl.u32 2131351028, %v2450
  %v2457 = vor.u32 %v2455, %v2456
  %v2458 = vshll.u32 2131351028, %v2449
  %v2459 = vshrl.u32 2102212464, %v2450
  %v2460 = vor.u32 %v2458, %v2459
  %v2461 = vshll.u32 2102212464, %v2449
  %v2462 = vshrl.u32 920167782, %v2450
  %v2463 = vor.u32 %v2461, %v2462
  %v2464 = vshll.u32 920167782, %v2449
  %v2465 = vshrl.u32 1326507024, %v2450
  %v2466 = vor.u32 %v2464, %v2465
  %vm2467 = vcmp.lt.s32.totalorder %v2448, 1
  %vm2468 = vcmp.lt.s32.totalorder %v2448, 2
  %vm2469 = vcmp.lt.s32.totalorder %v2448, 3
  %vm2470 = vcmp.lt.s32.totalorder %v2448, 4
  %v2471 = vsel %vm2467, %v2451, %v2454
  %v2472 = vsel %vm2470, %v2460, 2102212464
  %v2473 = vsel %vm2469, %v2457, %v2472
  %v2474 = vsel %vm2468, %v2471, %v2473
  %v2475 = vsel %vm2467, %v2454, %v2457
  %v2476 = vsel %vm2470, %v2463, 920167782
  %v2477 = vsel %vm2469, %v2460, %v2476
  %v2478 = vsel %vm2468, %v2475, %v2477
  %v2479 = vsel %vm2467, %v2457, %v2460
  %v2480 = vsel %vm2470, %v2466, 1326507024
  %v2481 = vsel %vm2469, %v2463, %v2480
  %v2482 = vsel %vm2468, %v2479, %v2481
  %v2483 = vshll.u32 %v2443, 8
  %v2484 = vmul.u32.u64.compose %v2483, %v2482
  %v2485 = vextract.low.u32 %v2484
  %v2486 = vextract.high.u32 %v2484
  %v2487 = vmul.u32.u64.compose %v2483, %v2478
  %v2488 = vextract.low.u32 %v2487
  %v2489 = vextract.high.u32 %v2487
  %v2490 = vmul.u32 %v2483, %v2474
  %v2491 = vadd.s32 %v2486, %v2488
  %vm2492 = vc.u32 %v2486, %v2488
  %v2493 = vadd.s32 %v2489, 1
  %v2494 = vsel %vm2492, %v2493, %v2489
  %v2495 = vadd.s32 %v2490, %v2494
  %v2496 = vadd.s32 %v2495, 536870912
  %v2497 = vshrl.u32 %v2496, 30
  %v2498 = vshll.u32 %v2497, 30
  %v2499 = vsub.s32 %v2495, %v2498
  %vm2500 = vcmp.lt.s32.totalorder %v2499, 0
  %v2501 = vsub.s32 0, %v2499
  %v2502 = vsel %vm2500, %v2501, %v2499
  %v2503 = vclz %v2502
  %v2504 = vsub.s32 %v2503, 2
  %vm2505 = vcmp.gt.s32.totalorder 0, %v2504
  %v2506 = vsel %vm2505, 0, %v2504
  %v2507 = vsub.s32 32, %v2506
  %v2508 = vshll.u32 %v2499, %v2506
  %v2509 = vshrl.u32 %v2491, %v2507
  %v2510 = vor.u32 %v2508, %v2509
  %v2511 = vsub.s32 4294967266, %v2506
  %v2512 = vadd.s32 %v2511, 127
  %v2513 = vshll.u32 %v2512, 23
  %v2514 = vor.u32 4788187, %v2513
  %v2515 = vand.u32 2147483647, %v2514
  %v2517 = vcvt.s32.f32 %v2510
  %v2518 = vmul.f32 %v2517, %v2515
  %v2519 = vxor.u32 %v2518, 2147483648
  %v2520 = vsel %vm2437, %v2519, %v2518
  %v2521 = vsub.s32 4, %v2497
  %v2522 = vsel %vm2437, %v2521, %v2497
  %v2523 = vsel %vm2436, %v1161, %v2520
  %v2524 = vsel %vm2436, 0, %v2522
  %v2525 = vcosq.f32.pop %v2523
  %v2526 = vsinq.f32.pop %v2523
  %vm2527 = vweird.f32 %v1161
  %v2528 = vadd.s32 %v2524, 3
  %v2529 = vand.u32 %v2528, 3
  %vm2530 = vcmp.lt.s32.totalorder %v2529, 2
  %vm2531 = vcmp.eq.s32.totalorder %v2529, 0
  %v2532 = vxor.u32 %v2526, 2147483648
  %v2533 = vsel %vm2531, %v2525, %v2532
  %vm2534 = vcmp.eq.s32.totalorder %v2529, 2
  %v2535 = vxor.u32 %v2525, 2147483648
  %v2536 = vsel %vm2534, %v2535, %v2526
  %v2537 = vsel %vm2530, %v2533, %v2536
  %v2538 = vsel %vm2527, nan, %v2537
  %v2539 = vand.u32 2147483647, %v1167
  %vm2540 = vcmp.le.f32.partialorder %v2539, 0.7853982
  %vm2541 = vcmp.lt.s32.totalorder %v1167, 0
  %v2542 = vand.u32 %v1167, 2139095040
  %v2543 = vshrl.u32 %v2542, 23
  %v2544 = vsub.s32 %v2543, 127
  %v2545 = vand.u32 2147483647, %v1167
  %v2546 = vand.u32 %v2545, 8388607
  %v2547 = vor.u32 %v2546, 8388608
  %v2548 = vsub.s32 0, %v2547
  %v2549 = vadd.s32 %v2544, 1
  %vm2550 = vcmp.gt.s32.totalorder %v2549, 0
  %v2551 = vsel %vm2550, %v2549, 0
  %v2552 = vshrl.u32 %v2551, 5
  %v2553 = vand.u32 %v2551, 31
  %v2554 = vsub.s32 32, %v2553
  %v2555 = vshrl.u32 683565275, %v2554
  %v2556 = vshll.u32 683565275, %v2553
  %v2557 = vshrl.u32 2475754826, %v2554
  %v2558 = vor.u32 %v2556, %v2557
  %v2559 = vshll.u32 2475754826, %v2553
  %v2560 = vshrl.u32 2131351028, %v2554
  %v2561 = vor.u32 %v2559, %v2560
  %v2562 = vshll.u32 2131351028, %v2553
  %v2563 = vshrl.u32 2102212464, %v2554
  %v2564 = vor.u32 %v2562, %v2563
  %v2565 = vshll.u32 2102212464, %v2553
  %v2566 = vshrl.u32 920167782, %v2554
  %v2567 = vor.u32 %v2565, %v2566
  %v2568 = vshll.u32 920167782, %v2553
  %v2569 = vshrl.u32 1326507024, %v2554
  %v2570 = vor.u32 %v2568, %v2569
  %vm2571 = vcmp.lt.s32.totalorder %v2552, 1
  %vm2572 = vcmp.lt.s32.totalorder %v2552, 2
  %vm2573 = vcmp.lt.s32.totalorder %v2552, 3
  %vm2574 = vcmp.lt.s32.totalorder %v2552, 4
  %v2575 = vsel %vm2571, %v2555, %v2558
  %v2576 = vsel %vm2574, %v2564, 2102212464
  %v2577 = vsel %vm2573, %v2561, %v2576
  %v2578 = vsel %vm2572, %v2575, %v2577
  %v2579 = vsel %vm2571, %v2558, %v2561
  %v2580 = vsel %vm2574, %v2567, 920167782
  %v2581 = vsel %vm2573, %v2564, %v2580
  %v2582 = vsel %vm2572, %v2579, %v2581
  %v2583 = vsel %vm2571, %v2561, %v2564
  %v2584 = vsel %vm2574, %v2570, 1326507024
  %v2585 = vsel %vm2573, %v2567, %v2584
  %v2586 = vsel %vm2572, %v2583, %v2585
  %v2587 = vshll.u32 %v2547, 8
  %v2588 = vmul.u32.u64.compose %v2587, %v2586
  %v2589 = vextract.low.u32 %v2588
  %v2590 = vextract.high.u32 %v2588
  %v2591 = vmul.u32.u64.compose %v2587, %v2582
  %v2592 = vextract.low.u32 %v2591
  %v2593 = vextract.high.u32 %v2591
  %v2594 = vmul.u32 %v2587, %v2578
  %v2595 = vadd.s32 %v2590, %v2592
  %vm2596 = vc.u32 %v2590, %v2592
  %v2597 = vadd.s32 %v2593, 1
  %v2598 = vsel %vm2596, %v2597, %v2593
  %v2599 = vadd.s32 %v2594, %v2598
  %v2600 = vadd.s32 %v2599, 536870912
  %v2601 = vshrl.u32 %v2600, 30
  %v2602 = vshll.u32 %v2601, 30
  %v2603 = vsub.s32 %v2599, %v2602
  %vm2604 = vcmp.lt.s32.totalorder %v2603, 0
  %v2605 = vsub.s32 0, %v2603
  %v2606 = vsel %vm2604, %v2605, %v2603
  %v2607 = vclz %v2606
  %v2608 = vsub.s32 %v2607, 2
  %vm2609 = vcmp.gt.s32.totalorder 0, %v2608
  %v2610 = vsel %vm2609, 0, %v2608
  %v2611 = vsub.s32 32, %v2610
  %v2612 = vshll.u32 %v2603, %v2610
  %v2613 = vshrl.u32 %v2595, %v2611
  %v2614 = vor.u32 %v2612, %v2613
  %v2615 = vsub.s32 4294967266, %v2610
  %v2616 = vadd.s32 %v2615, 127
  %v2617 = vshll.u32 %v2616, 23
  %v2618 = vor.u32 4788187, %v2617
  %v2619 = vand.u32 2147483647, %v2618
  %v2621 = vcvt.s32.f32 %v2614
  %v2622 = vmul.f32 %v2621, %v2619
  %v2623 = vxor.u32 %v2622, 2147483648
  %v2624 = vsel %vm2541, %v2623, %v2622
  %v2625 = vsub.s32 4, %v2601
  %v2626 = vsel %vm2541, %v2625, %v2601
  %v2627 = vsel %vm2540, %v1167, %v2624
  %v2628 = vsel %vm2540, 0, %v2626
  %v2629 = vcosq.f32.pop %v2627
  %v2630 = vsinq.f32.pop %v2627
  %vm2631 = vweird.f32 %v1167
  %v2632 = vadd.s32 %v2628, 3
  %v2633 = vand.u32 %v2632, 3
  %vm2634 = vcmp.lt.s32.totalorder %v2633, 2
  %vm2635 = vcmp.eq.s32.totalorder %v2633, 0
  %v2636 = vxor.u32 %v2630, 2147483648
  %v2637 = vsel %vm2635, %v2629, %v2636
  %vm2638 = vcmp.eq.s32.totalorder %v2633, 2
  %v2639 = vxor.u32 %v2629, 2147483648
  %v2640 = vsel %vm2638, %v2639, %v2630
  %v2641 = vsel %vm2634, %v2637, %v2640
  %v2642 = vsel %vm2631, nan, %v2641
  %v2643 = vand.u32 2147483647, %v1173
  %vm2644 = vcmp.le.f32.partialorder %v2643, 0.7853982
  %vm2645 = vcmp.lt.s32.totalorder %v1173, 0
  %v2646 = vand.u32 %v1173, 2139095040
  %v2647 = vshrl.u32 %v2646, 23
  %v2648 = vsub.s32 %v2647, 127
  %v2649 = vand.u32 2147483647, %v1173
  %v2650 = vand.u32 %v2649, 8388607
  %v2651 = vor.u32 %v2650, 8388608
  %v2652 = vsub.s32 0, %v2651
  %v2653 = vadd.s32 %v2648, 1
  %vm2654 = vcmp.gt.s32.totalorder %v2653, 0
  %v2655 = vsel %vm2654, %v2653, 0
  %v2656 = vshrl.u32 %v2655, 5
  %v2657 = vand.u32 %v2655, 31
  %v2658 = vsub.s32 32, %v2657
  %v2659 = vshrl.u32 683565275, %v2658
  %v2660 = vshll.u32 683565275, %v2657
  %v2661 = vshrl.u32 2475754826, %v2658
  %v2662 = vor.u32 %v2660, %v2661
  %v2663 = vshll.u32 2475754826, %v2657
  %v2664 = vshrl.u32 2131351028, %v2658
  %v2665 = vor.u32 %v2663, %v2664
  %v2666 = vshll.u32 2131351028, %v2657
  %v2667 = vshrl.u32 2102212464, %v2658
  %v2668 = vor.u32 %v2666, %v2667
  %v2669 = vshll.u32 2102212464, %v2657
  %v2670 = vshrl.u32 920167782, %v2658
  %v2671 = vor.u32 %v2669, %v2670
  %v2672 = vshll.u32 920167782, %v2657
  %v2673 = vshrl.u32 1326507024, %v2658
  %v2674 = vor.u32 %v2672, %v2673
  %vm2675 = vcmp.lt.s32.totalorder %v2656, 1
  %vm2676 = vcmp.lt.s32.totalorder %v2656, 2
  %vm2677 = vcmp.lt.s32.totalorder %v2656, 3
  %vm2678 = vcmp.lt.s32.totalorder %v2656, 4
  %v2679 = vsel %vm2675, %v2659, %v2662
  %v2680 = vsel %vm2678, %v2668, 2102212464
  %v2681 = vsel %vm2677, %v2665, %v2680
  %v2682 = vsel %vm2676, %v2679, %v2681
  %v2683 = vsel %vm2675, %v2662, %v2665
  %v2684 = vsel %vm2678, %v2671, 920167782
  %v2685 = vsel %vm2677, %v2668, %v2684
  %v2686 = vsel %vm2676, %v2683, %v2685
  %v2687 = vsel %vm2675, %v2665, %v2668
  %v2688 = vsel %vm2678, %v2674, 1326507024
  %v2689 = vsel %vm2677, %v2671, %v2688
  %v2690 = vsel %vm2676, %v2687, %v2689
  %v2691 = vshll.u32 %v2651, 8
  %v2692 = vmul.u32.u64.compose %v2691, %v2690
  %v2693 = vextract.low.u32 %v2692
  %v2694 = vextract.high.u32 %v2692
  %v2695 = vmul.u32.u64.compose %v2691, %v2686
  %v2696 = vextract.low.u32 %v2695
  %v2697 = vextract.high.u32 %v2695
  %v2698 = vmul.u32 %v2691, %v2682
  %v2699 = vadd.s32 %v2694, %v2696
  %vm2700 = vc.u32 %v2694, %v2696
  %v2701 = vadd.s32 %v2697, 1
  %v2702 = vsel %vm2700, %v2701, %v2697
  %v2703 = vadd.s32 %v2698, %v2702
  %v2704 = vadd.s32 %v2703, 536870912
  %v2705 = vshrl.u32 %v2704, 30
  %v2706 = vshll.u32 %v2705, 30
  %v2707 = vsub.s32 %v2703, %v2706
  %vm2708 = vcmp.lt.s32.totalorder %v2707, 0
  %v2709 = vsub.s32 0, %v2707
  %v2710 = vsel %vm2708, %v2709, %v2707
  %v2711 = vclz %v2710
  %v2712 = vsub.s32 %v2711, 2
  %vm2713 = vcmp.gt.s32.totalorder 0, %v2712
  %v2714 = vsel %vm2713, 0, %v2712
  %v2715 = vsub.s32 32, %v2714
  %v2716 = vshll.u32 %v2707, %v2714
  %v2717 = vshrl.u32 %v2699, %v2715
  %v2718 = vor.u32 %v2716, %v2717
  %v2719 = vsub.s32 4294967266, %v2714
  %v2720 = vadd.s32 %v2719, 127
  %v2721 = vshll.u32 %v2720, 23
  %v2722 = vor.u32 4788187, %v2721
  %v2723 = vand.u32 2147483647, %v2722
  %v2725 = vcvt.s32.f32 %v2718
  %v2726 = vmul.f32 %v2725, %v2723
  %v2727 = vxor.u32 %v2726, 2147483648
  %v2728 = vsel %vm2645, %v2727, %v2726
  %v2729 = vsub.s32 4, %v2705
  %v2730 = vsel %vm2645, %v2729, %v2705
  %v2731 = vsel %vm2644, %v1173, %v2728
  %v2732 = vsel %vm2644, 0, %v2730
  %v2733 = vcosq.f32.pop %v2731
  %v2734 = vsinq.f32.pop %v2731
  %vm2735 = vweird.f32 %v1173
  %v2736 = vadd.s32 %v2732, 3
  %v2737 = vand.u32 %v2736, 3
  %vm2738 = vcmp.lt.s32.totalorder %v2737, 2
  %vm2739 = vcmp.eq.s32.totalorder %v2737, 0
  %v2740 = vxor.u32 %v2734, 2147483648
  %v2741 = vsel %vm2739, %v2733, %v2740
  %vm2742 = vcmp.eq.s32.totalorder %v2737, 2
  %v2743 = vxor.u32 %v2733, 2147483648
  %v2744 = vsel %vm2742, %v2743, %v2734
  %v2745 = vsel %vm2738, %v2741, %v2744
  %v2746 = vsel %vm2735, nan, %v2745
  %v2747 = vand.u32 2147483647, %v1179
  %vm2748 = vcmp.le.f32.partialorder %v2747, 0.7853982
  %vm2749 = vcmp.lt.s32.totalorder %v1179, 0
  %v2750 = vand.u32 %v1179, 2139095040
  %v2751 = vshrl.u32 %v2750, 23
  %v2752 = vsub.s32 %v2751, 127
  %v2753 = vand.u32 2147483647, %v1179
  %v2754 = vand.u32 %v2753, 8388607
  %v2755 = vor.u32 %v2754, 8388608
  %v2756 = vsub.s32 0, %v2755
  %v2757 = vadd.s32 %v2752, 1
  %vm2758 = vcmp.gt.s32.totalorder %v2757, 0
  %v2759 = vsel %vm2758, %v2757, 0
  %v2760 = vshrl.u32 %v2759, 5
  %v2761 = vand.u32 %v2759, 31
  %v2762 = vsub.s32 32, %v2761
  %v2763 = vshrl.u32 683565275, %v2762
  %v2764 = vshll.u32 683565275, %v2761
  %v2765 = vshrl.u32 2475754826, %v2762
  %v2766 = vor.u32 %v2764, %v2765
  %v2767 = vshll.u32 2475754826, %v2761
  %v2768 = vshrl.u32 2131351028, %v2762
  %v2769 = vor.u32 %v2767, %v2768
  %v2770 = vshll.u32 2131351028, %v2761
  %v2771 = vshrl.u32 2102212464, %v2762
  %v2772 = vor.u32 %v2770, %v2771
  %v2773 = vshll.u32 2102212464, %v2761
  %v2774 = vshrl.u32 920167782, %v2762
  %v2775 = vor.u32 %v2773, %v2774
  %v2776 = vshll.u32 920167782, %v2761
  %v2777 = vshrl.u32 1326507024, %v2762
  %v2778 = vor.u32 %v2776, %v2777
  %vm2779 = vcmp.lt.s32.totalorder %v2760, 1
  %vm2780 = vcmp.lt.s32.totalorder %v2760, 2
  %vm2781 = vcmp.lt.s32.totalorder %v2760, 3
  %vm2782 = vcmp.lt.s32.totalorder %v2760, 4
  %v2783 = vsel %vm2779, %v2763, %v2766
  %v2784 = vsel %vm2782, %v2772, 2102212464
  %v2785 = vsel %vm2781, %v2769, %v2784
  %v2786 = vsel %vm2780, %v2783, %v2785
  %v2787 = vsel %vm2779, %v2766, %v2769
  %v2788 = vsel %vm2782, %v2775, 920167782
  %v2789 = vsel %vm2781, %v2772, %v2788
  %v2790 = vsel %vm2780, %v2787, %v2789
  %v2791 = vsel %vm2779, %v2769, %v2772
  %v2792 = vsel %vm2782, %v2778, 1326507024
  %v2793 = vsel %vm2781, %v2775, %v2792
  %v2794 = vsel %vm2780, %v2791, %v2793
  %v2795 = vshll.u32 %v2755, 8
  %v2796 = vmul.u32.u64.compose %v2795, %v2794
  %v2797 = vextract.low.u32 %v2796
  %v2798 = vextract.high.u32 %v2796
  %v2799 = vmul.u32.u64.compose %v2795, %v2790
  %v2800 = vextract.low.u32 %v2799
  %v2801 = vextract.high.u32 %v2799
  %v2802 = vmul.u32 %v2795, %v2786
  %v2803 = vadd.s32 %v2798, %v2800
  %vm2804 = vc.u32 %v2798, %v2800
  %v2805 = vadd.s32 %v2801, 1
  %v2806 = vsel %vm2804, %v2805, %v2801
  %v2807 = vadd.s32 %v2802, %v2806
  %v2808 = vadd.s32 %v2807, 536870912
  %v2809 = vshrl.u32 %v2808, 30
  %v2810 = vshll.u32 %v2809, 30
  %v2811 = vsub.s32 %v2807, %v2810
  %vm2812 = vcmp.lt.s32.totalorder %v2811, 0
  %v2813 = vsub.s32 0, %v2811
  %v2814 = vsel %vm2812, %v2813, %v2811
  %v2815 = vclz %v2814
  %v2816 = vsub.s32 %v2815, 2
  %vm2817 = vcmp.gt.s32.totalorder 0, %v2816
  %v2818 = vsel %vm2817, 0, %v2816
  %v2819 = vsub.s32 32, %v2818
  %v2820 = vshll.u32 %v2811, %v2818
  %v2821 = vshrl.u32 %v2803, %v2819
  %v2822 = vor.u32 %v2820, %v2821
  %v2823 = vsub.s32 4294967266, %v2818
  %v2824 = vadd.s32 %v2823, 127
  %v2825 = vshll.u32 %v2824, 23
  %v2826 = vor.u32 4788187, %v2825
  %v2827 = vand.u32 2147483647, %v2826
  %v2829 = vcvt.s32.f32 %v2822
  %v2830 = vmul.f32 %v2829, %v2827
  %v2831 = vxor.u32 %v2830, 2147483648
  %v2832 = vsel %vm2749, %v2831, %v2830
  %v2833 = vsub.s32 4, %v2809
  %v2834 = vsel %vm2749, %v2833, %v2809
  %v2835 = vsel %vm2748, %v1179, %v2832
  %v2836 = vsel %vm2748, 0, %v2834
  %v2837 = vcosq.f32.pop %v2835
  %v2838 = vsinq.f32.pop %v2835
  %vm2839 = vweird.f32 %v1179
  %v2840 = vadd.s32 %v2836, 3
  %v2841 = vand.u32 %v2840, 3
  %vm2842 = vcmp.lt.s32.totalorder %v2841, 2
  %vm2843 = vcmp.eq.s32.totalorder %v2841, 0
  %v2844 = vxor.u32 %v2838, 2147483648
  %v2845 = vsel %vm2843, %v2837, %v2844
  %vm2846 = vcmp.eq.s32.totalorder %v2841, 2
  %v2847 = vxor.u32 %v2837, 2147483648
  %v2848 = vsel %vm2846, %v2847, %v2838
  %v2849 = vsel %vm2842, %v2845, %v2848
  %v2850 = vsel %vm2839, nan, %v2849
  %v2851 = vsel %vm1186, %v1290, %v1089
  %v2852 = vsel %vm1186, %v1394, %v1095
  %v2853 = vsel %vm1186, %v1498, %v1101
  %v2854 = vsel %vm1186, %v1602, %v1107
  %v2855 = vsel %vm1186, %v1706, %v1113
  %v2856 = vsel %vm1186, %v1810, %v1119
  %v2857 = vsel %vm1186, %v1914, %v1125
  %v2858 = vsel %vm1186, %v2018, %v1131
  %v2859 = vsel %vm1186, %v2122, %v1137
  %v2860 = vsel %vm1186, %v2226, %v1143
  %v2861 = vsel %vm1186, %v2330, %v1149
  %v2862 = vsel %vm1186, %v2434, %v1155
  %v2863 = vsel %vm1186, %v2538, %v1161
  %v2864 = vsel %vm1186, %v2642, %v1167
  %v2865 = vsel %vm1186, %v2746, %v1173
  %v2866 = vsel %vm1186, %v2850, %v1179
  %vm2867 = vcmask 556032
  %2868 = vst.msk [vmem:[%s3] sm:$0xff] %vm2867, %v2851
  %2869 = vst.msk [vmem:[%s3 + $0x8] sm:$0xff] %vm2867, %v2852
  %2870 = vst.msk [vmem:[%s3 + $0x10] sm:$0xff] %vm2867, %v2853
  %2871 = vst.msk [vmem:[%s3 + $0x18] sm:$0xff] %vm2867, %v2854
  %2872 = vst.msk [vmem:[%s3 + $0x20] sm:$0xff] %vm2867, %v2855
  %2873 = vst.msk [vmem:[%s3 + $0x28] sm:$0xff] %vm2867, %v2856
  %2874 = vst.msk [vmem:[%s3 + $0x30] sm:$0xff] %vm2867, %v2857
  %2875 = vst.msk [vmem:[%s3 + $0x38] sm:$0xff] %vm2867, %v2858
  %2876 = vst.msk [vmem:[%s3 + $0x40] sm:$0xff] %vm2867, %v2859
  %2877 = vst.msk [vmem:[%s3 + $0x48] sm:$0xff] %vm2867, %v2860
  %2878 = vst.msk [vmem:[%s3 + $0x50] sm:$0xff] %vm2867, %v2861
  %2879 = vst.msk [vmem:[%s3 + $0x58] sm:$0xff] %vm2867, %v2862
  %2880 = vst.msk [vmem:[%s3 + $0x60] sm:$0xff] %vm2867, %v2863
  %2881 = vst.msk [vmem:[%s3 + $0x68] sm:$0xff] %vm2867, %v2864
  %2882 = vst.msk [vmem:[%s3 + $0x70] sm:$0xff] %vm2867, %v2865
  %2883 = vst.msk [vmem:[%s3 + $0x78] sm:$0xff] %vm2867, %v2866
  // Predicated region
  $region14: #{tpu_custom_call.1} parent=0 // pred_check
    _
  $region15: #{tpu_custom_call.1} parent=0 // pred_check_branch
    %2885 = sbr.rel (0) target = $region17
  $region16: #{tpu_custom_call.1} parent=0 // pred_region
    _
  $region17: #{tpu_custom_call.1} parent=0 // pred_fallthru
    _
  // Predicated region
  $region18: #{tpu_custom_call.1} parent=0 // pred_check
    _
  $region19: #{tpu_custom_call.1} parent=0 // pred_check_branch
    %2887 = sbr.rel (0) target = $region21
  $region20: #{tpu_custom_call.1} parent=0 // pred_region
    _
  $region21: #{tpu_custom_call.1} parent=0 // pred_fallthru
    _

</llo_original>
